<compile_context>
chip_gen: v7x
topology: tpu7x:2x2x1
jax: 0.10.0
libtpu: 0.0.40
codegen_flags: <defaults>
</compile_context>

<pallas_src>
import functools

import jax
import jax.numpy as jnp
from jax.experimental import pallas as pl
from jax.experimental.pallas import tpu as pltpu

NEG_SLOPE = 0.01   # nn.LeakyReLU default
BN_EPS = 1e-5      # nn.BatchNorm1d default


def _round_up(x, m):
    return ((x + m - 1) // m) * m


# ---------------------------------------------------------------------------
# Pass A: conv-as-patch-matmul + per-channel sum / sum-of-squares accumulation
# ---------------------------------------------------------------------------
def _conv_stats_kernel(p_ref, w_ref, y_ref, stats_ref, acc_ref, *, m_valid):
    """One M-tile of the conv matmul plus BN sufficient statistics.

    p_ref:     (tile_m, K) bf16 patch tile          (K = kernel_size * C_in)
    w_ref:     (K, O_pad)  bf16 weight (constant block index -> stays resident)
    y_ref:     (tile_m, O_pad) f32 pre-BN conv output tile
    stats_ref: (2, O_pad)  f32 [mean; inv_std] (written on the last tile)
    acc_ref:   (2, O_pad)  f32 VMEM scratch [sum; sum_sq], persists across grid
    """
    i = pl.program_id(0)
    tile_m = p_ref.shape[0]

    @pl.when(i == 0)
    def _init():
        acc_ref[...] = jnp.zeros_like(acc_ref)

    y = jnp.dot(p_ref[...], w_ref[...], preferred_element_type=jnp.float32)
    y_ref[...] = y

    # Mask rows that are pure M-padding out of the batch statistics.
    row = i * tile_m + jax.lax.broadcasted_iota(jnp.int32, y.shape, 0)
    yv = jnp.where(row < m_valid, y, 0.0)
    acc_ref[0:1, :] += jnp.sum(yv, axis=0, keepdims=True)
    acc_ref[1:2, :] += jnp.sum(yv * yv, axis=0, keepdims=True)

    @pl.when(i == pl.num_programs(0) - 1)
    def _finalize():
        inv_n = 1.0 / m_valid
        mean = acc_ref[0:1, :] * inv_n
        ex2 = acc_ref[1:2, :] * inv_n
        var = jnp.maximum(ex2 - mean * mean, 0.0)     # f32 sufficient statistics
        stats_ref[0:1, :] = mean
        stats_ref[1:2, :] = jax.lax.rsqrt(var + BN_EPS)


# ---------------------------------------------------------------------------
# Pass B: BN normalize + affine + LeakyReLU (f32 epilogue, lane-dense stores)
# ---------------------------------------------------------------------------
def _bn_lrelu_kernel(y_ref, stats_ref, g_ref, b_ref, o_ref):
    y = y_ref[...]
    mean = stats_ref[0:1, :]
    scale = stats_ref[1:2, :] * g_ref[...]
    z = (y - mean) * scale + b_ref[...]
    o_ref[...] = jnp.where(z >= 0.0, z, NEG_SLOPE * z)


# ---------------------------------------------------------------------------
# Wrapper: PyTorch Conv_block.forward semantics, NCL in / NCL out
# ---------------------------------------------------------------------------
def conv_block(x_ncl, w_ock, gamma, beta, *, stride, tile_m=256,
               compute_dtype=jnp.bfloat16):
    B, C, L = x_ncl.shape
    O, C_w, k = w_ock.shape
    assert C_w == C, (C_w, C)
    L_out = (L - k) // stride + 1
    assert L_out >= 1
    M = B * L_out
    K = k * C

    # --- channels-last patches (glue; no heavy activation transposes) -------
    x_blc = jnp.transpose(x_ncl, (0, 2, 1))                       # (B, L, C)
    if stride == k:                                               # pure reshape
        patches = x_blc[:, : L_out * k, :].reshape(B, L_out, k, C)
    else:                                                         # single gather
        idx = jnp.arange(L_out)[:, None] * stride + jnp.arange(k)[None, :]
        patches = x_blc[:, idx, :]                                # (B, L_out, k, C)
    patches = patches.reshape(M, K)

    # weight (O, C, k) -> (k*C, O): matches (j major, c minor) patch layout
    w = jnp.transpose(w_ock, (2, 1, 0)).reshape(K, O)

    # --- TPU-friendly padding ------------------------------------------------
    if M < tile_m:
        tile_m = max(8, _round_up(M, 8))
    M_pad = _round_up(M, tile_m)
    O_pad = _round_up(O, 128)          # lane-dense output stores
    n_tiles = M_pad // tile_m

    patches_p = jnp.pad(patches.astype(compute_dtype), ((0, M_pad - M), (0, 0)))
    w_p = jnp.pad(w.astype(compute_dtype), ((0, 0), (0, O_pad - O)))
    g_p = jnp.pad(gamma.astype(jnp.float32), (0, O_pad - O)).reshape(1, O_pad)
    b_p = jnp.pad(beta.astype(jnp.float32), (0, O_pad - O)).reshape(1, O_pad)

    # --- pass A: conv matmul + BN sufficient statistics ----------------------
    y, stats = pl.pallas_call(
        functools.partial(_conv_stats_kernel, m_valid=M),
        out_shape=(
            jax.ShapeDtypeStruct((M_pad, O_pad), jnp.float32),
            jax.ShapeDtypeStruct((2, O_pad), jnp.float32),
        ),
        grid=(n_tiles,),
        in_specs=[
            pl.BlockSpec((tile_m, K), lambda i: (i, 0)),
            pl.BlockSpec((K, O_pad), lambda i: (0, 0)),
        ],
        out_specs=(
            pl.BlockSpec((tile_m, O_pad), lambda i: (i, 0)),
            pl.BlockSpec((2, O_pad), lambda i: (0, 0)),
        ),
        scratch_shapes=[pltpu.VMEM((2, O_pad), jnp.float32)],
        compiler_params=pltpu.CompilerParams(
            dimension_semantics=("arbitrary",)),
    )(patches_p, w_p)

    # --- pass B: normalize + affine + LeakyReLU ------------------------------
    out = pl.pallas_call(
        _bn_lrelu_kernel,
        out_shape=jax.ShapeDtypeStruct((M_pad, O_pad), jnp.float32),
        grid=(n_tiles,),
        in_specs=[
            pl.BlockSpec((tile_m, O_pad), lambda i: (i, 0)),
            pl.BlockSpec((2, O_pad), lambda i: (0, 0)),
            pl.BlockSpec((1, O_pad), lambda i: (0, 0)),
            pl.BlockSpec((1, O_pad), lambda i: (0, 0)),
        ],
        out_specs=pl.BlockSpec((tile_m, O_pad), lambda i: (i, 0)),
        compiler_params=pltpu.CompilerParams(
            dimension_semantics=("parallel",)),
    )(y, stats, g_p, b_p)

    # glue: drop padding, back to PyTorch NCL layout
    out = out[:M, :O].reshape(B, L_out, O)
    return jnp.transpose(out, (0, 2, 1))


# ---------------------------------------------------------------------------
# Pure-JAX reference (f32) mirroring the torch module in training mode
# ---------------------------------------------------------------------------
def conv_block_reference(x_ncl, w_ock, gamma, beta, *, stride):
    y = jax.lax.conv_general_dilated(
        x_ncl, w_ock, window_strides=(stride,), padding="VALID",
        dimension_numbers=("NCH", "OIH", "NCH"))
    mean = jnp.mean(y, axis=(0, 2), keepdims=True)
    var = jnp.mean((y - mean) ** 2, axis=(0, 2), keepdims=True)
    z = (y - mean) * jax.lax.rsqrt(var + BN_EPS)
    z = z * gamma[None, :, None] + beta[None, :, None]
    return jnp.where(z >= 0.0, z, NEG_SLOPE * z)


if __name__ == "__main__":
    key = jax.random.PRNGKey(0)

    configs = [
        # (B, C_in, C_out, kernel, stride, L)
        (2, 4, 32, 3, 1, 300),    # overlapping windows; multi-tile M with row padding
        (2, 32, 64, 4, 4, 64),    # stride == kernel_size (Link_model style); single tile
    ]

    fwd = jax.jit(conv_block, static_argnames=("stride", "tile_m", "compute_dtype"))

    for (B, C, O, k, s, L) in configs:
        key, kx, kw, kg, kb = jax.random.split(key, 5)
        x = jax.random.normal(kx, (B, C, L), jnp.float32)
        w = jax.random.normal(kw, (O, C, k), jnp.float32) / jnp.sqrt(C * k)
        gamma = 1.0 + 0.1 * jax.random.normal(kg, (O,), jnp.float32)
        beta = 0.1 * jax.random.normal(kb, (O,), jnp.float32)

        out = jax.block_until_ready(fwd(x, w, gamma, beta, stride=s))
        ref = conv_block_reference(x, w, gamma, beta, stride=s)

        assert out.shape == ref.shape, (out.shape, ref.shape)
        err = float(jnp.max(jnp.abs(out - ref)))
        assert err < 1e-1, f"max abs err {err}"  # bf16 matmul, f32 accum/epilogue

    print("KERNEL_OK")
</pallas_src>

<mosaic_0001>
module attributes {stable_mosaic.version = 11 : i64} {
  func.func @_bn_lrelu_kernel(%arg0: i32, %arg1: memref<256x128xf32, #tpu.memory_space<vmem>>, %arg2: memref<2x128xf32, #tpu.memory_space<vmem>>, %arg3: memref<1x128xf32, #tpu.memory_space<vmem>>, %arg4: memref<1x128xf32, #tpu.memory_space<vmem>>, %arg5: memref<256x128xf32, #tpu.memory_space<vmem>>) attributes {dimension_semantics = [#tpu.dimension_semantics<parallel>], iteration_bounds = array<i64: 3>, scalar_prefetch = 0 : i64, scratch_operands = 0 : i64, tpu.core_type = #tpu.core_type<tc>, window_params = [{transform_indices = @transform_0, window_bounds = array<i64: 256, 128>}, {pipeline_mode = #tpu.pipeline_mode<synchronous>, transform_indices = @transform_1, window_bounds = array<i64: 2, 128>}, {pipeline_mode = #tpu.pipeline_mode<synchronous>, transform_indices = @transform_2, window_bounds = array<i64: 1, 128>}, {pipeline_mode = #tpu.pipeline_mode<synchronous>, transform_indices = @transform_3, window_bounds = array<i64: 1, 128>}, {transform_indices = @transform_4, window_bounds = array<i64: 256, 128>}]} {
    %c0 = arith.constant 0 : index
    %c0_0 = arith.constant 0 : index
    %0 = vector.load %arg1[%c0, %c0_0] : memref<256x128xf32, #tpu.memory_space<vmem>>, vector<256x128xf32>
    %c0_1 = arith.constant 0 : index
    %c0_2 = arith.constant 0 : index
    %1 = vector.load %arg2[%c0_1, %c0_2] : memref<2x128xf32, #tpu.memory_space<vmem>>, vector<1x128xf32>
    %c1 = arith.constant 1 : index
    %c0_3 = arith.constant 0 : index
    %2 = vector.load %arg2[%c1, %c0_3] : memref<2x128xf32, #tpu.memory_space<vmem>>, vector<1x128xf32>
    %c0_4 = arith.constant 0 : index
    %c0_5 = arith.constant 0 : index
    %3 = vector.load %arg3[%c0_4, %c0_5] : memref<1x128xf32, #tpu.memory_space<vmem>>, vector<1x128xf32>
    %4 = arith.mulf %2, %3 : vector<1x128xf32>
    %5 = vector.broadcast %1 : vector<1x128xf32> to vector<256x128xf32>
    %6 = arith.subf %0, %5 : vector<256x128xf32>
    %7 = vector.broadcast %4 : vector<1x128xf32> to vector<256x128xf32>
    %8 = arith.mulf %6, %7 : vector<256x128xf32>
    %c0_6 = arith.constant 0 : index
    %c0_7 = arith.constant 0 : index
    %9 = vector.load %arg4[%c0_6, %c0_7] : memref<1x128xf32, #tpu.memory_space<vmem>>, vector<1x128xf32>
    %10 = vector.broadcast %9 : vector<1x128xf32> to vector<256x128xf32>
    %11 = arith.addf %8, %10 : vector<256x128xf32>
    %cst = arith.constant 0.000000e+00 : f32
    %12 = vector.broadcast %cst : f32 to vector<256x128xf32>
    %13 = arith.cmpf oge, %11, %12 : vector<256x128xf32>
    %cst_8 = arith.constant 0.00999999977 : f32
    %14 = vector.broadcast %cst_8 : f32 to vector<256x128xf32>
    %15 = arith.mulf %14, %11 : vector<256x128xf32>
    %16 = arith.select %13, %11, %15 : vector<256x128xi1>, vector<256x128xf32>
    %c0_9 = arith.constant 0 : index
    %c0_10 = arith.constant 0 : index
    %17 = vector.load %arg5[%c0_9, %c0_10] : memref<256x128xf32, #tpu.memory_space<vmem>>, vector<256x128xf32>
    tpu.vector_store %arg5[%c0_9, %c0_10], %16 {strides = array<i32>} : memref<256x128xf32, #tpu.memory_space<vmem>>, vector<256x128xf32>,
    return
  }
  func.func @transform_0(%arg0: i32) -> (i32, i32) {
    %c0_i32 = arith.constant 0 : i32
    %c0_i32_0 = arith.constant 0 : i32
    return %arg0, %c0_i32 : i32, i32
  }
  func.func @transform_1(%arg0: i32) -> (i32, i32) {
    %c0_i32 = arith.constant 0 : i32
    %c0_i32_0 = arith.constant 0 : i32
    %c0_i32_1 = arith.constant 0 : i32
    return %c0_i32, %c0_i32_0 : i32, i32
  }
  func.func @transform_2(%arg0: i32) -> (i32, i32) {
    %c0_i32 = arith.constant 0 : i32
    %c0_i32_0 = arith.constant 0 : i32
    %c0_i32_1 = arith.constant 0 : i32
    return %c0_i32, %c0_i32_0 : i32, i32
  }
  func.func @transform_3(%arg0: i32) -> (i32, i32) {
    %c0_i32 = arith.constant 0 : i32
    %c0_i32_0 = arith.constant 0 : i32
    %c0_i32_1 = arith.constant 0 : i32
    return %c0_i32, %c0_i32_0 : i32, i32
  }
  func.func @transform_4(%arg0: i32) -> (i32, i32) {
    %c0_i32 = arith.constant 0 : i32
    %c0_i32_0 = arith.constant 0 : i32
    return %arg0, %c0_i32 : i32, i32
  }
}

module attributes {stable_mosaic.version = 11 : i64} {
  func.func @_conv_stats_kernel(%arg0: i32, %arg1: memref<256x12xbf16, #tpu.memory_space<vmem>>, %arg2: memref<12x128xbf16, #tpu.memory_space<vmem>>, %arg3: memref<256x128xf32, #tpu.memory_space<vmem>>, %arg4: memref<2x128xf32, #tpu.memory_space<vmem>>, %arg5: memref<2x128xf32, #tpu.memory_space<vmem>>) attributes {dimension_semantics = [#tpu.dimension_semantics<arbitrary>], iteration_bounds = array<i64: 3>, scalar_prefetch = 0 : i64, scratch_operands = 1 : i64, tpu.core_type = #tpu.core_type<tc>, window_params = [{transform_indices = @transform_0, window_bounds = array<i64: 256, 12>}, {pipeline_mode = #tpu.pipeline_mode<synchronous>, transform_indices = @transform_1, window_bounds = array<i64: 12, 128>}, {transform_indices = @transform_2, window_bounds = array<i64: 256, 128>}, {pipeline_mode = #tpu.pipeline_mode<synchronous>, transform_indices = @transform_3, window_bounds = array<i64: 2, 128>}]} {
    %c0_i32 = arith.constant 0 : i32
    %0 = arith.cmpi eq, %arg0, %c0_i32 : i32
    %1 = arith.extui %0 : i1 to i32
    %c0_i32_0 = arith.constant 0 : i32
    %2 = arith.cmpi ne, %1, %c0_i32_0 : i32
    scf.if %2 {
      %cst_17 = arith.constant 0.000000e+00 : f32
      %29 = vector.broadcast %cst_17 : f32 to vector<2x128xf32>
      %c0_18 = arith.constant 0 : index
      %c0_19 = arith.constant 0 : index
      %30 = vector.load %arg5[%c0_18, %c0_19] : memref<2x128xf32, #tpu.memory_space<vmem>>, vector<2x128xf32>
      tpu.vector_store %arg5[%c0_18, %c0_19], %29 {strides = array<i32>} : memref<2x128xf32, #tpu.memory_space<vmem>>, vector<2x128xf32>,
    } else {
    }
    %c0 = arith.constant 0 : index
    %c0_1 = arith.constant 0 : index
    %3 = vector.load %arg1[%c0, %c0_1] : memref<256x12xbf16, #tpu.memory_space<vmem>>, vector<256x12xbf16>
    %c0_2 = arith.constant 0 : index
    %c0_3 = arith.constant 0 : index
    %4 = vector.load %arg2[%c0_2, %c0_3] : memref<12x128xbf16, #tpu.memory_space<vmem>>, vector<12x128xbf16>
    %cst = arith.constant dense<0.000000e+00> : vector<256x128xf32>
    %5 = tpu.matmul %3, %4, %cst {dimension_numbers = #tpu.dot_dimension_numbers<[1], [0], [0], [1], [0, 0, 1, 1], [], []>} : vector<256x12xbf16>, vector<12x128xbf16>, vector<256x128xf32> -> vector<256x128xf32>
    %c0_4 = arith.constant 0 : index
    %c0_5 = arith.constant 0 : index
    %6 = vector.load %arg3[%c0_4, %c0_5] : memref<256x128xf32, #tpu.memory_space<vmem>>, vector<256x128xf32>
    tpu.vector_store %arg3[%c0_4, %c0_5], %5 {strides = array<i32>} : memref<256x128xf32, #tpu.memory_space<vmem>>, vector<256x128xf32>,
    %c256_i32 = arith.constant 256 : i32
    %7 = arith.muli %arg0, %c256_i32 : i32
    %8 = tpu.iota {dimensions = array<i32: 0>} : vector<256x128xi32>
    %9 = vector.broadcast %7 : i32 to vector<256x128xi32>
    %10 = arith.addi %9, %8 : vector<256x128xi32>
    %c596_i32 = arith.constant 596 : i32
    %11 = vector.broadcast %c596_i32 : i32 to vector<256x128xi32>
    %12 = arith.cmpi slt, %10, %11 : vector<256x128xi32>
    %cst_6 = arith.constant 0.000000e+00 : f32
    %13 = vector.broadcast %cst_6 : f32 to vector<256x128xf32>
    %14 = arith.select %12, %5, %13 : vector<256x128xi1>, vector<256x128xf32>
    %c0_7 = arith.constant 0 : index
    %c0_8 = arith.constant 0 : index
    %15 = vector.load %arg5[%c0_7, %c0_8] : memref<2x128xf32, #tpu.memory_space<vmem>>, vector<1x128xf32>
    %cst_9 = arith.constant dense<0.000000e+00> : vector<128xf32>
    %16 = vector.multi_reduction <add>, %14, %cst_9 [0] : vector<256x128xf32> to vector<128xf32>
    %17 = vector.shape_cast %16 : vector<128xf32> to vector<1x128xf32>
    %18 = arith.addf %15, %17 : vector<1x128xf32>
    %c0_10 = arith.constant 0 : index
    %c0_11 = arith.constant 0 : index
    %19 = vector.load %arg5[%c0_10, %c0_11] : memref<2x128xf32, #tpu.memory_space<vmem>>, vector<1x128xf32>
    tpu.vector_store %arg5[%c0_10, %c0_11], %18 {strides = array<i32>} : memref<2x128xf32, #tpu.memory_space<vmem>>, vector<1x128xf32>,
    %c1 = arith.constant 1 : index
    %c0_12 = arith.constant 0 : index
    %20 = vector.load %arg5[%c1, %c0_12] : memref<2x128xf32, #tpu.memory_space<vmem>>, vector<1x128xf32>
    %21 = arith.mulf %14, %14 : vector<256x128xf32>
    %cst_13 = arith.constant dense<0.000000e+00> : vector<128xf32>
    %22 = vector.multi_reduction <add>, %21, %cst_13 [0] : vector<256x128xf32> to vector<128xf32>
    %23 = vector.shape_cast %22 : vector<128xf32> to vector<1x128xf32>
    %24 = arith.addf %20, %23 : vector<1x128xf32>
    %c1_14 = arith.constant 1 : index
    %c0_15 = arith.constant 0 : index
    %25 = vector.load %arg5[%c1_14, %c0_15] : memref<2x128xf32, #tpu.memory_space<vmem>>, vector<1x128xf32>
    tpu.vector_store %arg5[%c1_14, %c0_15], %24 {strides = array<i32>} : memref<2x128xf32, #tpu.memory_space<vmem>>, vector<1x128xf32>,
    %c2_i32 = arith.constant 2 : i32
    %26 = arith.cmpi eq, %arg0, %c2_i32 : i32
    %27 = arith.extui %26 : i1 to i32
    %c0_i32_16 = arith.constant 0 : i32
    %28 = arith.cmpi ne, %27, %c0_i32_16 : i32
    scf.if %28 {
      %c0_17 = arith.constant 0 : index
      %c0_18 = arith.constant 0 : index
      %29 = vector.load %arg5[%c0_17, %c0_18] : memref<2x128xf32, #tpu.memory_space<vmem>>, vector<1x128xf32>
      %cst_19 = arith.constant 0.00167785236 : f32
      %30 = vector.broadcast %cst_19 : f32 to vector<1x128xf32>
      %31 = arith.mulf %29, %30 : vector<1x128xf32>
      %c1_20 = arith.constant 1 : index
      %c0_21 = arith.constant 0 : index
      %32 = vector.load %arg5[%c1_20, %c0_21] : memref<2x128xf32, #tpu.memory_space<vmem>>, vector<1x128xf32>
      %cst_22 = arith.constant 0.00167785236 : f32
      %33 = vector.broadcast %cst_22 : f32 to vector<1x128xf32>
      %34 = arith.mulf %32, %33 : vector<1x128xf32>
      %35 = arith.mulf %31, %31 : vector<1x128xf32>
      %36 = arith.subf %34, %35 : vector<1x128xf32>
      %cst_23 = arith.constant 0.000000e+00 : f32
      %37 = vector.broadcast %cst_23 : f32 to vector<1x128xf32>
      %38 = arith.maximumf %36, %37 : vector<1x128xf32>
      %c0_24 = arith.constant 0 : index
      %c0_25 = arith.constant 0 : index
      %39 = vector.load %arg4[%c0_24, %c0_25] : memref<2x128xf32, #tpu.memory_space<vmem>>, vector<1x128xf32>
      tpu.vector_store %arg4[%c0_24, %c0_25], %31 {strides = array<i32>} : memref<2x128xf32, #tpu.memory_space<vmem>>, vector<1x128xf32>,
      %cst_26 = arith.constant 9.99999974E-6 : f32
      %40 = vector.broadcast %cst_26 : f32 to vector<1x128xf32>
      %41 = arith.addf %38, %40 : vector<1x128xf32>
      %42 = math.rsqrt %41 : vector<1x128xf32>
      %c1_27 = arith.constant 1 : index
      %c0_28 = arith.constant 0 : index
      %43 = vector.load %arg4[%c1_27, %c0_28] : memref<2x128xf32, #tpu.memory_space<vmem>>, vector<1x128xf32>
      tpu.vector_store %arg4[%c1_27, %c0_28], %42 {strides = array<i32>} : memref<2x128xf32, #tpu.memory_space<vmem>>, vector<1x128xf32>,
    } else {
    }
    return
  }
  func.func @transform_0(%arg0: i32) -> (i32, i32) {
    %c0_i32 = arith.constant 0 : i32
    %c0_i32_0 = arith.constant 0 : i32
    return %arg0, %c0_i32 : i32, i32
  }
  func.func @transform_1(%arg0: i32) -> (i32, i32) {
    %c0_i32 = arith.constant 0 : i32
    %c0_i32_0 = arith.constant 0 : i32
    %c0_i32_1 = arith.constant 0 : i32
    return %c0_i32, %c0_i32_0 : i32, i32
  }
  func.func @transform_2(%arg0: i32) -> (i32, i32) {
    %c0_i32 = arith.constant 0 : i32
    %c0_i32_0 = arith.constant 0 : i32
    return %arg0, %c0_i32 : i32, i32
  }
  func.func @transform_3(%arg0: i32) -> (i32, i32) {
    %c0_i32 = arith.constant 0 : i32
    %c0_i32_0 = arith.constant 0 : i32
    %c0_i32_1 = arith.constant 0 : i32
    return %c0_i32, %c0_i32_0 : i32, i32
  }
}

</mosaic_0001>

<llo_original>
// kernel: conv_block.3
$region0: #{conv_block.3}
  #allocation0 [shape = 'u32[]', space=smem, size = 0x4, offset = 0x4, fixed_abs, tag = 'smem constant byte address 0x4 - core index']
  #allocation1 [shape = 'u32[144,128]{1,0:T(1,128)}', space=vmem, size = 0x12000, scoped, tag = 'internal scratch']
  %s0 = inlined_call_operand.vmem [shape: f32[768,128], index: 0, kind: input, shape index: {}]
  %s1 = inlined_call_operand.vmem [shape: f32[2,128], index: 1, kind: input, shape index: {}]
  %s2 = inlined_call_operand.vmem [shape: f32[1,128], index: 2, kind: input, shape index: {}]
  %s3 = inlined_call_operand.vmem [shape: f32[1,128], index: 3, kind: input, shape index: {}]
  %s4 = inlined_call_operand.vmem [shape: f32[768,128], index: 4, kind: output, shape index: {}]
  %s5 = sld [smem:[#allocation0]]
  $region49: #{conv_block.3} parent=0
    _
  %s7 = ssub.s32 1, %s5
  %s8 = scalar_select 0, %s7, %s5
  loop: start=0, step=1, limit=5
  $region2: #{conv_block.3} parent=0 // loop_pre_header
    _
  $region3: #{conv_block.3} parent=0 // loop_header
    %s10 = sphi 0, %s14
    %p11 = scmp.ge.s32.totalorder %s10, 5
    %s20 = sphi 0, %s22
    %s23 = sphi 0, %s20
    %s24 = sphi 0, %s23
    %s40 = sphi 0, %s24
    %s44 = sphi 0, %s44
    %s46 = sphi 0, %s44
    %s47 = sphi 0, %s46
    %s61 = sphi 0, %s47
    %s65 = sphi 0, %s65
    %s67 = sphi 0, %s65
    %s68 = sphi 0, %s67
    %s82 = sphi 0, %s68
    %s86 = sphi 0, %s86
    %s88 = sphi 0, %s86
    %s89 = sphi 0, %s88
    %s103 = sphi 0, %s89
    %s109 = sphi 0, %s111
    %s112 = sphi 0, %s109
    %s113 = sphi 0, %s112
    %s129 = sphi 0, %s113
  $region4: #{conv_block.3} parent=0 // loop_header_branch
    %13 = sbr.rel (%p11) target = $region8
  $region5: #{conv_block.3} parent=0 // loop_body
    %s15 = ssub.s32 %s10, 1
    %s16 = ssub.s32 %s10, 2
    %s17 = sadd.s32 %s10, 1
    %s18 = ssub.s32 %s10, %s17
    %p19 = scmp.eq.s32.totalorder %s18, 0
    %s21 = sadd.s32 %s20, 1
    %s22 = scalar_select %p19, %s20, %s21
    %p25 = pneg %p19
    %p26 = scmp.eq.s32.totalorder %s10, 2
    %p27 = por %p25, %p26
    %p28 = scmp.ne.s32.totalorder %s20, %s23
    %p29 = scmp.eq.s32.totalorder %s10, 0
    %p30 = por %p28, %p29
    %p31 = scmp.ne.s32.totalorder %s20, %s23
    %p32 = scmp.eq.s32.totalorder %s15, 2
    %p33 = por %p31, %p32
    %p34 = scmp.ne.s32.totalorder %s23, %s24
    %p35 = scmp.eq.s32.totalorder %s15, 0
    %p36 = por %p34, %p35
    %p37 = scmp.ne.s32.totalorder %s23, %s24
    %p38 = scmp.eq.s32.totalorder %s16, 2
    %p39 = por %p37, %p38
    %p41 = scmp.ne.s32.totalorder %s24, %s40
    %p42 = scmp.eq.s32.totalorder %s16, 0
    %p43 = por %p41, %p42
    %s45 = sadd.s32 %s44, 1
    %p48 = scmp.eq.s32.totalorder %s10, 2
    %p49 = scmp.ne.s32.totalorder %s44, %s46
    %p50 = scmp.eq.s32.totalorder %s10, 0
    %p51 = por %p49, %p50
    %p52 = scmp.ne.s32.totalorder %s44, %s46
    %p53 = scmp.eq.s32.totalorder %s15, 2
    %p54 = por %p52, %p53
    %p55 = scmp.ne.s32.totalorder %s46, %s47
    %p56 = scmp.eq.s32.totalorder %s15, 0
    %p57 = por %p55, %p56
    %p58 = scmp.ne.s32.totalorder %s46, %s47
    %p59 = scmp.eq.s32.totalorder %s16, 2
    %p60 = por %p58, %p59
    %p62 = scmp.ne.s32.totalorder %s47, %s61
    %p63 = scmp.eq.s32.totalorder %s16, 0
    %p64 = por %p62, %p63
    %s66 = sadd.s32 %s65, 1
    %p69 = scmp.eq.s32.totalorder %s10, 2
    %p70 = scmp.ne.s32.totalorder %s65, %s67
    %p71 = scmp.eq.s32.totalorder %s10, 0
    %p72 = por %p70, %p71
    %p73 = scmp.ne.s32.totalorder %s65, %s67
    %p74 = scmp.eq.s32.totalorder %s15, 2
    %p75 = por %p73, %p74
    %p76 = scmp.ne.s32.totalorder %s67, %s68
    %p77 = scmp.eq.s32.totalorder %s15, 0
    %p78 = por %p76, %p77
    %p79 = scmp.ne.s32.totalorder %s67, %s68
    %p80 = scmp.eq.s32.totalorder %s16, 2
    %p81 = por %p79, %p80
    %p83 = scmp.ne.s32.totalorder %s68, %s82
    %p84 = scmp.eq.s32.totalorder %s16, 0
    %p85 = por %p83, %p84
    %s87 = sadd.s32 %s86, 1
    %p90 = scmp.eq.s32.totalorder %s10, 2
    %p91 = scmp.ne.s32.totalorder %s86, %s88
    %p92 = scmp.eq.s32.totalorder %s10, 0
    %p93 = por %p91, %p92
    %p94 = scmp.ne.s32.totalorder %s86, %s88
    %p95 = scmp.eq.s32.totalorder %s15, 2
    %p96 = por %p94, %p95
    %p97 = scmp.ne.s32.totalorder %s88, %s89
    %p98 = scmp.eq.s32.totalorder %s15, 0
    %p99 = por %p97, %p98
    %p100 = scmp.ne.s32.totalorder %s88, %s89
    %p101 = scmp.eq.s32.totalorder %s16, 2
    %p102 = por %p100, %p101
    %p104 = scmp.ne.s32.totalorder %s89, %s103
    %p105 = scmp.eq.s32.totalorder %s16, 0
    %p106 = por %p104, %p105
    %s107 = ssub.s32 %s10, %s17
    %p108 = scmp.eq.s32.totalorder %s107, 0
    %s110 = sadd.s32 %s109, 1
    %s111 = scalar_select %p108, %s109, %s110
    %p114 = pneg %p108
    %p115 = scmp.eq.s32.totalorder %s10, 2
    %p116 = por %p114, %p115
    %p117 = scmp.ne.s32.totalorder %s109, %s112
    %p118 = scmp.eq.s32.totalorder %s10, 0
    %p119 = por %p117, %p118
    %p120 = scmp.ne.s32.totalorder %s109, %s112
    %p121 = scmp.eq.s32.totalorder %s15, 2
    %p122 = por %p120, %p121
    %p123 = scmp.ne.s32.totalorder %s112, %s113
    %p124 = scmp.eq.s32.totalorder %s15, 0
    %p125 = por %p123, %p124
    %p126 = scmp.ne.s32.totalorder %s112, %s113
    %p127 = scmp.eq.s32.totalorder %s16, 2
    %p128 = por %p126, %p127
    %p130 = scmp.ne.s32.totalorder %s113, %s129
    %p131 = scmp.eq.s32.totalorder %s16, 0
    %p132 = por %p130, %p131
    %p133 = scmp.le.s32.totalorder 1, %s10
    %p134 = scmp.lt.s32.totalorder %s10, 4
    %p135 = pnand %p133, %p134
    %p136 = pneg %p135
    // Predicated region
    $region9: #{conv_block.3} parent=5 // pred_check
      _
    $region10: #{conv_block.3} parent=5 // pred_check_branch
      %138 = sbr.rel (%p135) target = $region12
    $region11: #{conv_block.3} parent=5 // pred_region
      %s139 = ssub.s32 %s10, 1
      // Predicated region
      $region13: #{conv_block.3} parent=11 // pred_check
        %p140 = pneg %p57
      $region14: #{conv_block.3} parent=11 // pred_check_branch
        %142 = sbr.rel (%p140) target = $region16
      $region15: #{conv_block.3} parent=11 // pred_region
        _
      $region16: #{conv_block.3} parent=11 // pred_fallthru
        _
      // Predicated region
      $region17: #{conv_block.3} parent=11 // pred_check
        %p143 = pneg %p78
      $region18: #{conv_block.3} parent=11 // pred_check_branch
        %145 = sbr.rel (%p143) target = $region20
      $region19: #{conv_block.3} parent=11 // pred_region
        _
      $region20: #{conv_block.3} parent=11 // pred_fallthru
        _
      // Predicated region
      $region21: #{conv_block.3} parent=11 // pred_check
        %p146 = pneg %p99
      $region22: #{conv_block.3} parent=11 // pred_check_branch
        %148 = sbr.rel (%p146) target = $region24
      $region23: #{conv_block.3} parent=11 // pred_region
        _
      $region24: #{conv_block.3} parent=11 // pred_fallthru
        _
    $region12: #{conv_block.3} parent=5 // pred_fallthru
      _
    %p149 = scmp.lt.s32.totalorder %s10, 3
    // Predicated region
    $region25: #{conv_block.3} parent=5 // pred_check
      %p150 = pneg %p149
    $region26: #{conv_block.3} parent=5 // pred_check_branch
      %152 = sbr.rel (%p150) target = $region28
    $region27: #{conv_block.3} parent=5 // pred_region
      // Predicated region
      $region29: #{conv_block.3} parent=27 // pred_check
        %p153 = pneg %p30
      $region30: #{conv_block.3} parent=27 // pred_check_branch
        %155 = sbr.rel (%p153) target = $region32
      $region31: #{conv_block.3} parent=27 // pred_region
        %s156 = smul.u32 32, %s10
        %p157 = scmp.lt.s32.totalorder %s156, 95
        %s158 = scalar_select %p157, %s156, 95
        %s159 = smul.addr %s158, 8
        %s160 = scalar_lea.vmem %s0, %s159
        %s161 = smul.u32 32, %s10
      $region32: #{conv_block.3} parent=27 // pred_fallthru
        _
    $region28: #{conv_block.3} parent=5 // pred_fallthru
      _
    %p162 = scmp.le.s32.totalorder 1, %s10
    %p163 = scmp.lt.s32.totalorder %s10, 4
    %p164 = pnand %p162, %p163
    %p165 = pneg %p164
    // Predicated region
    $region33: #{conv_block.3} parent=5 // pred_check
      _
    $region34: #{conv_block.3} parent=5 // pred_check_branch
      %167 = sbr.rel (%p164) target = $region36
    $region35: #{conv_block.3} parent=5 // pred_region
      %s168 = ssub.s32 %s10, 1
      %s169 = smul.u32 32, %s15
      %p170 = scmp.lt.s32.totalorder %s169, 95
      %s171 = scalar_select %p170, %s169, 95
      %s172 = smul.addr %s171, 8
      %s173 = scalar_lea.vmem %s0, %s172
      %p174 = pneg %p36
      %p175 = pneg %p33
      %p176 = pneg %p57
      %p177 = pneg %p54
      %p178 = pneg %p78
      %p179 = pneg %p75
      %p180 = pneg %p99
      %p181 = pneg %p96
      %p182 = pneg %p125
      %p183 = pneg %p122
      %s184 = smul.u32 32, %s15
      %p185 = scmp.lt.s32.totalorder %s184, 95
      %s186 = scalar_select %p185, %s184, 95
      %s187 = smul.addr %s186, 8
      %s188 = scalar_lea.vmem %s4, %s187
      %s189 = smul.u32 32, %s15
      %p190 = scmp.lt.s32.totalorder %s189, 95
      %s191 = scalar_select %p190, %s189, 95
      %s192 = smul.addr %s191, 8
      %s193 = scalar_lea.vmem %s0, %s192
      %s194 = smul.u32 32, %s15
      %s195 = smul.u32 32, %s15
      %p196 = scmp.lt.s32.totalorder %s195, 95
      %s197 = scalar_select %p196, %s195, 95
      %s198 = smul.addr %s197, 8
      %s199 = scalar_lea.vmem %s4, %s198
      %s200 = smul.u32 32, %s15
      %v201 = vld [vmem:[%s193] sm:$0xff]
      %v202 = vld [vmem:[%s193 + $0x8] sm:$0xff]
      %v203 = vld [vmem:[%s193 + $0x10] sm:$0xff]
      %v204 = vld [vmem:[%s193 + $0x18] sm:$0xff]
      %v205 = vld [vmem:[%s193 + $0x20] sm:$0xff]
      %v206 = vld [vmem:[%s193 + $0x28] sm:$0xff]
      %v207 = vld [vmem:[%s193 + $0x30] sm:$0xff]
      %v208 = vld [vmem:[%s193 + $0x38] sm:$0xff]
      %v209 = vld [vmem:[%s193 + $0x40] sm:$0xff]
      %v210 = vld [vmem:[%s193 + $0x48] sm:$0xff]
      %v211 = vld [vmem:[%s193 + $0x50] sm:$0xff]
      %v212 = vld [vmem:[%s193 + $0x58] sm:$0xff]
      %v213 = vld [vmem:[%s193 + $0x60] sm:$0xff]
      %v214 = vld [vmem:[%s193 + $0x68] sm:$0xff]
      %v215 = vld [vmem:[%s193 + $0x70] sm:$0xff]
      %v216 = vld [vmem:[%s193 + $0x78] sm:$0xff]
      %v217 = vld [vmem:[%s193 + $0x80] sm:$0xff]
      %v218 = vld [vmem:[%s193 + $0x88] sm:$0xff]
      %v219 = vld [vmem:[%s193 + $0x90] sm:$0xff]
      %v220 = vld [vmem:[%s193 + $0x98] sm:$0xff]
      %v221 = vld [vmem:[%s193 + $0xa0] sm:$0xff]
      %v222 = vld [vmem:[%s193 + $0xa8] sm:$0xff]
      %v223 = vld [vmem:[%s193 + $0xb0] sm:$0xff]
      %v224 = vld [vmem:[%s193 + $0xb8] sm:$0xff]
      %v225 = vld [vmem:[%s193 + $0xc0] sm:$0xff]
      %v226 = vld [vmem:[%s193 + $0xc8] sm:$0xff]
      %v227 = vld [vmem:[%s193 + $0xd0] sm:$0xff]
      %v228 = vld [vmem:[%s193 + $0xd8] sm:$0xff]
      %v229 = vld [vmem:[%s193 + $0xe0] sm:$0xff]
      %v230 = vld [vmem:[%s193 + $0xe8] sm:$0xff]
      %v231 = vld [vmem:[%s193 + $0xf0] sm:$0xff]
      %v232 = vld [vmem:[%s193 + $0xf8] sm:$0xff]
      %v233 = vld [vmem:[%s1] sm:$0x1]
      %v234 = vld [vmem:[%s1 + $0x1] sm:$0x1]
      %v235 = vld [vmem:[%s2] sm:$0x1]
      %v236 = vmul.f32 %v234, %v235
      %v237 = vlaneseq
      %v238 = vshrl.u32 %v237, 7
      %v239 = vsub.s32 0, %v238
      %v240 = vrot.slane %v233, %v239
      %v241 = vsub.f32 %v201, %v240
      %v242 = vsub.f32 %v202, %v240
      %v243 = vsub.f32 %v203, %v240
      %v244 = vsub.f32 %v204, %v240
      %v245 = vsub.f32 %v205, %v240
      %v246 = vsub.f32 %v206, %v240
      %v247 = vsub.f32 %v207, %v240
      %v248 = vsub.f32 %v208, %v240
      %v249 = vsub.f32 %v209, %v240
      %v250 = vsub.f32 %v210, %v240
      %v251 = vsub.f32 %v211, %v240
      %v252 = vsub.f32 %v212, %v240
      %v253 = vsub.f32 %v213, %v240
      %v254 = vsub.f32 %v214, %v240
      %v255 = vsub.f32 %v215, %v240
      %v256 = vsub.f32 %v216, %v240
      %v257 = vsub.f32 %v217, %v240
      %v258 = vsub.f32 %v218, %v240
      %v259 = vsub.f32 %v219, %v240
      %v260 = vsub.f32 %v220, %v240
      %v261 = vsub.f32 %v221, %v240
      %v262 = vsub.f32 %v222, %v240
      %v263 = vsub.f32 %v223, %v240
      %v264 = vsub.f32 %v224, %v240
      %v265 = vsub.f32 %v225, %v240
      %v266 = vsub.f32 %v226, %v240
      %v267 = vsub.f32 %v227, %v240
      %v268 = vsub.f32 %v228, %v240
      %v269 = vsub.f32 %v229, %v240
      %v270 = vsub.f32 %v230, %v240
      %v271 = vsub.f32 %v231, %v240
      %v272 = vsub.f32 %v232, %v240
      %v273 = vlaneseq
      %v274 = vshrl.u32 %v273, 7
      %v275 = vsub.s32 0, %v274
      %v276 = vrot.slane %v236, %v275
      %v277 = vmul.f32 %v241, %v276
      %v278 = vmul.f32 %v242, %v276
      %v279 = vmul.f32 %v243, %v276
      %v280 = vmul.f32 %v244, %v276
      %v281 = vmul.f32 %v245, %v276
      %v282 = vmul.f32 %v246, %v276
      %v283 = vmul.f32 %v247, %v276
      %v284 = vmul.f32 %v248, %v276
      %v285 = vmul.f32 %v249, %v276
      %v286 = vmul.f32 %v250, %v276
      %v287 = vmul.f32 %v251, %v276
      %v288 = vmul.f32 %v252, %v276
      %v289 = vmul.f32 %v253, %v276
      %v290 = vmul.f32 %v254, %v276
      %v291 = vmul.f32 %v255, %v276
      %v292 = vmul.f32 %v256, %v276
      %v293 = vmul.f32 %v257, %v276
      %v294 = vmul.f32 %v258, %v276
      %v295 = vmul.f32 %v259, %v276
      %v296 = vmul.f32 %v260, %v276
      %v297 = vmul.f32 %v261, %v276
      %v298 = vmul.f32 %v262, %v276
      %v299 = vmul.f32 %v263, %v276
      %v300 = vmul.f32 %v264, %v276
      %v301 = vmul.f32 %v265, %v276
      %v302 = vmul.f32 %v266, %v276
      %v303 = vmul.f32 %v267, %v276
      %v304 = vmul.f32 %v268, %v276
      %v305 = vmul.f32 %v269, %v276
      %v306 = vmul.f32 %v270, %v276
      %v307 = vmul.f32 %v271, %v276
      %v308 = vmul.f32 %v272, %v276
      %v309 = vld [vmem:[%s3] sm:$0x1]
      %v311 = vlaneseq
      %v312 = vshrl.u32 %v311, 7
      %v313 = vsub.s32 0, %v312
      %v314 = vrot.slane %v309, %v313
      %v316 = vadd.f32 %v277, %v314
      %v317 = vadd.f32 %v278, %v314
      %v318 = vadd.f32 %v279, %v314
      %v319 = vadd.f32 %v280, %v314
      %v320 = vadd.f32 %v281, %v314
      %v321 = vadd.f32 %v282, %v314
      %v322 = vadd.f32 %v283, %v314
      %v323 = vadd.f32 %v284, %v314
      %v324 = vadd.f32 %v285, %v314
      %v325 = vadd.f32 %v286, %v314
      %v326 = vadd.f32 %v287, %v314
      %v327 = vadd.f32 %v288, %v314
      %v328 = vadd.f32 %v289, %v314
      %v329 = vadd.f32 %v290, %v314
      %v330 = vadd.f32 %v291, %v314
      %v331 = vadd.f32 %v292, %v314
      %v332 = vadd.f32 %v293, %v314
      %v333 = vadd.f32 %v294, %v314
      %v334 = vadd.f32 %v295, %v314
      %v335 = vadd.f32 %v296, %v314
      %v336 = vadd.f32 %v297, %v314
      %v337 = vadd.f32 %v298, %v314
      %v338 = vadd.f32 %v299, %v314
      %v339 = vadd.f32 %v300, %v314
      %v340 = vadd.f32 %v301, %v314
      %v341 = vadd.f32 %v302, %v314
      %v342 = vadd.f32 %v303, %v314
      %v343 = vadd.f32 %v304, %v314
      %v344 = vadd.f32 %v305, %v314
      %v345 = vadd.f32 %v306, %v314
      %v346 = vadd.f32 %v307, %v314
      %v347 = vadd.f32 %v308, %v314
      %vm348 = vcmp.ge.f32.partialorder %v316, 0.0
      %vm349 = vcmp.ge.f32.partialorder %v317, 0.0
      %vm350 = vcmp.ge.f32.partialorder %v318, 0.0
      %vm351 = vcmp.ge.f32.partialorder %v319, 0.0
      %vm352 = vcmp.ge.f32.partialorder %v320, 0.0
      %vm353 = vcmp.ge.f32.partialorder %v321, 0.0
      %vm354 = vcmp.ge.f32.partialorder %v322, 0.0
      %vm355 = vcmp.ge.f32.partialorder %v323, 0.0
      %vm356 = vcmp.ge.f32.partialorder %v324, 0.0
      %vm357 = vcmp.ge.f32.partialorder %v325, 0.0
      %vm358 = vcmp.ge.f32.partialorder %v326, 0.0
      %vm359 = vcmp.ge.f32.partialorder %v327, 0.0
      %vm360 = vcmp.ge.f32.partialorder %v328, 0.0
      %vm361 = vcmp.ge.f32.partialorder %v329, 0.0
      %vm362 = vcmp.ge.f32.partialorder %v330, 0.0
      %vm363 = vcmp.ge.f32.partialorder %v331, 0.0
      %vm364 = vcmp.ge.f32.partialorder %v332, 0.0
      %vm365 = vcmp.ge.f32.partialorder %v333, 0.0
      %vm366 = vcmp.ge.f32.partialorder %v334, 0.0
      %vm367 = vcmp.ge.f32.partialorder %v335, 0.0
      %vm368 = vcmp.ge.f32.partialorder %v336, 0.0
      %vm369 = vcmp.ge.f32.partialorder %v337, 0.0
      %vm370 = vcmp.ge.f32.partialorder %v338, 0.0
      %vm371 = vcmp.ge.f32.partialorder %v339, 0.0
      %vm372 = vcmp.ge.f32.partialorder %v340, 0.0
      %vm373 = vcmp.ge.f32.partialorder %v341, 0.0
      %vm374 = vcmp.ge.f32.partialorder %v342, 0.0
      %vm375 = vcmp.ge.f32.partialorder %v343, 0.0
      %vm376 = vcmp.ge.f32.partialorder %v344, 0.0
      %vm377 = vcmp.ge.f32.partialorder %v345, 0.0
      %vm378 = vcmp.ge.f32.partialorder %v346, 0.0
      %vm379 = vcmp.ge.f32.partialorder %v347, 0.0
      %v380 = vmul.f32 %v316, 0.01
      %v381 = vmul.f32 %v317, 0.01
      %v382 = vmul.f32 %v318, 0.01
      %v383 = vmul.f32 %v319, 0.01
      %v384 = vmul.f32 %v320, 0.01
      %v385 = vmul.f32 %v321, 0.01
      %v386 = vmul.f32 %v322, 0.01
      %v387 = vmul.f32 %v323, 0.01
      %v388 = vmul.f32 %v324, 0.01
      %v389 = vmul.f32 %v325, 0.01
      %v390 = vmul.f32 %v326, 0.01
      %v391 = vmul.f32 %v327, 0.01
      %v392 = vmul.f32 %v328, 0.01
      %v393 = vmul.f32 %v329, 0.01
      %v394 = vmul.f32 %v330, 0.01
      %v395 = vmul.f32 %v331, 0.01
      %v396 = vmul.f32 %v332, 0.01
      %v397 = vmul.f32 %v333, 0.01
      %v398 = vmul.f32 %v334, 0.01
      %v399 = vmul.f32 %v335, 0.01
      %v400 = vmul.f32 %v336, 0.01
      %v401 = vmul.f32 %v337, 0.01
      %v402 = vmul.f32 %v338, 0.01
      %v403 = vmul.f32 %v339, 0.01
      %v404 = vmul.f32 %v340, 0.01
      %v405 = vmul.f32 %v341, 0.01
      %v406 = vmul.f32 %v342, 0.01
      %v407 = vmul.f32 %v343, 0.01
      %v408 = vmul.f32 %v344, 0.01
      %v409 = vmul.f32 %v345, 0.01
      %v410 = vmul.f32 %v346, 0.01
      %v411 = vmul.f32 %v347, 0.01
      %v412 = vsel %vm348, %v316, %v380
      %v413 = vsel %vm349, %v317, %v381
      %v414 = vsel %vm350, %v318, %v382
      %v415 = vsel %vm351, %v319, %v383
      %v416 = vsel %vm352, %v320, %v384
      %v417 = vsel %vm353, %v321, %v385
      %v418 = vsel %vm354, %v322, %v386
      %v419 = vsel %vm355, %v323, %v387
      %v420 = vsel %vm356, %v324, %v388
      %v421 = vsel %vm357, %v325, %v389
      %v422 = vsel %vm358, %v326, %v390
      %v423 = vsel %vm359, %v327, %v391
      %v424 = vsel %vm360, %v328, %v392
      %v425 = vsel %vm361, %v329, %v393
      %v426 = vsel %vm362, %v330, %v394
      %v427 = vsel %vm363, %v331, %v395
      %v428 = vsel %vm364, %v332, %v396
      %v429 = vsel %vm365, %v333, %v397
      %v430 = vsel %vm366, %v334, %v398
      %v431 = vsel %vm367, %v335, %v399
      %v432 = vsel %vm368, %v336, %v400
      %v433 = vsel %vm369, %v337, %v401
      %v434 = vsel %vm370, %v338, %v402
      %v435 = vsel %vm371, %v339, %v403
      %v436 = vsel %vm372, %v340, %v404
      %v437 = vsel %vm373, %v341, %v405
      %v438 = vsel %vm374, %v342, %v406
      %v439 = vsel %vm375, %v343, %v407
      %v440 = vsel %vm376, %v344, %v408
      %v441 = vsel %vm377, %v345, %v409
      %v442 = vsel %vm378, %v346, %v410
      %v443 = vsel %vm379, %v347, %v411
      %444 = vst [vmem:[%s199] sm:$0xff] %v412
      %445 = vst [vmem:[%s199 + $0x8] sm:$0xff] %v413
      %446 = vst [vmem:[%s199 + $0x10] sm:$0xff] %v414
      %447 = vst [vmem:[%s199 + $0x18] sm:$0xff] %v415
      %448 = vst [vmem:[%s199 + $0x20] sm:$0xff] %v416
      %449 = vst [vmem:[%s199 + $0x28] sm:$0xff] %v417
      %450 = vst [vmem:[%s199 + $0x30] sm:$0xff] %v418
      %451 = vst [vmem:[%s199 + $0x38] sm:$0xff] %v419
      %452 = vst [vmem:[%s199 + $0x40] sm:$0xff] %v420
      %453 = vst [vmem:[%s199 + $0x48] sm:$0xff] %v421
      %454 = vst [vmem:[%s199 + $0x50] sm:$0xff] %v422
      %455 = vst [vmem:[%s199 + $0x58] sm:$0xff] %v423
      %456 = vst [vmem:[%s199 + $0x60] sm:$0xff] %v424
      %457 = vst [vmem:[%s199 + $0x68] sm:$0xff] %v425
      %458 = vst [vmem:[%s199 + $0x70] sm:$0xff] %v426
      %459 = vst [vmem:[%s199 + $0x78] sm:$0xff] %v427
      %460 = vst [vmem:[%s199 + $0x80] sm:$0xff] %v428
      %461 = vst [vmem:[%s199 + $0x88] sm:$0xff] %v429
      %462 = vst [vmem:[%s199 + $0x90] sm:$0xff] %v430
      %463 = vst [vmem:[%s199 + $0x98] sm:$0xff] %v431
      %464 = vst [vmem:[%s199 + $0xa0] sm:$0xff] %v432
      %465 = vst [vmem:[%s199 + $0xa8] sm:$0xff] %v433
      %466 = vst [vmem:[%s199 + $0xb0] sm:$0xff] %v434
      %467 = vst [vmem:[%s199 + $0xb8] sm:$0xff] %v435
      %468 = vst [vmem:[%s199 + $0xc0] sm:$0xff] %v436
      %469 = vst [vmem:[%s199 + $0xc8] sm:$0xff] %v437
      %470 = vst [vmem:[%s199 + $0xd0] sm:$0xff] %v438
      %471 = vst [vmem:[%s199 + $0xd8] sm:$0xff] %v439
      %472 = vst [vmem:[%s199 + $0xe0] sm:$0xff] %v440
      %473 = vst [vmem:[%s199 + $0xe8] sm:$0xff] %v441
      %474 = vst [vmem:[%s199 + $0xf0] sm:$0xff] %v442
      %475 = vst [vmem:[%s199 + $0xf8] sm:$0xff] %v443
      %s476 = smul.u32 32, %s15
      %p477 = scmp.lt.s32.totalorder %s476, 95
      %s478 = scalar_select %p477, %s476, 95
      %s479 = smul.addr %s478, 8
      %s480 = scalar_lea.vmem %s4, %s479
      // Predicated region
      $region37: #{conv_block.3} parent=35 // pred_check
        %p481 = pneg %p122
      $region38: #{conv_block.3} parent=35 // pred_check_branch
        %483 = sbr.rel (%p481) target = $region40
      $region39: #{conv_block.3} parent=35 // pred_region
        %s484 = smul.u32 32, %s15
      $region40: #{conv_block.3} parent=35 // pred_fallthru
        _
    $region36: #{conv_block.3} parent=5 // pred_fallthru
      _
    %p485 = scmp.le.s32.totalorder 2, %s10
    // Predicated region
    $region41: #{conv_block.3} parent=5 // pred_check
      %p486 = pneg %p485
    $region42: #{conv_block.3} parent=5 // pred_check_branch
      %488 = sbr.rel (%p486) target = $region44
    $region43: #{conv_block.3} parent=5 // pred_region
      %s489 = ssub.s32 %s10, 2
      // Predicated region
      $region45: #{conv_block.3} parent=43 // pred_check
        %p490 = pneg %p128
      $region46: #{conv_block.3} parent=43 // pred_check_branch
        %492 = sbr.rel (%p490) target = $region48
      $region47: #{conv_block.3} parent=43 // pred_region
        %s493 = smul.u32 32, %s16
        %p494 = scmp.lt.s32.totalorder %s493, 95
        %s495 = scalar_select %p494, %s493, 95
        %s496 = smul.addr %s495, 8
        %s497 = scalar_lea.vmem %s4, %s496
      $region48: #{conv_block.3} parent=43 // pred_fallthru
        _
    $region44: #{conv_block.3} parent=5 // pred_fallthru
      _
  $region6: #{conv_block.3} parent=0 // loop_footer
    %s14 = sadd.s32 1, %s10
  $region7: #{conv_block.3} parent=0 // loop_footer_branch
    %9 = sbr.rel target = $region3
  $region8: #{conv_block.3} parent=0 // loop_exit
    _

// kernel: conv_block.2
$region0: #{conv_block.2}
  #allocation0 [shape = 'u32[]', space=smem, size = 0x4, offset = 0x4, fixed_abs, tag = 'smem constant byte address 0x4 - core index']
  #allocation1 [shape = 'u32[144,128]{1,0:T(1,128)}', space=vmem, size = 0x12000, scoped, tag = 'internal scratch']
  #allocation2 [shape = 'f32[2,128]{1,0:T(2,128)}', space=vmem, size = 0x400, scoped, tag = 'scratch operand']
  %s0 = inlined_call_operand.vmem [shape: bf16[768,12], index: 0, kind: input, shape index: {}]
  %s1 = inlined_call_operand.vmem [shape: bf16[12,128], index: 1, kind: input, shape index: {}]
  %s2 = inlined_call_operand.vmem [shape: f32[768,128], index: 2, kind: output, shape index: {0}]
  %s3 = inlined_call_operand.vmem [shape: f32[2,128], index: 3, kind: output, shape index: {1}]
  %4 = xla_tuple %s2, %s3
  %s5 = sld [smem:[#allocation0]]
  $region57: #{conv_block.2} parent=0
    _
  %s7 = ssub.s32 1, %s5
  %s8 = scalar_select 0, %s7, %s5
  loop: start=0, step=1, limit=5
  $region2: #{conv_block.2} parent=0 // loop_pre_header
    _
  $region3: #{conv_block.2} parent=0 // loop_header
    %s10 = sphi 0, %s14
    %p11 = scmp.ge.s32.totalorder %s10, 5
    %s20 = sphi 0, %s22
    %s23 = sphi 0, %s20
    %s24 = sphi 0, %s23
    %s40 = sphi 0, %s24
    %s44 = sphi 0, %s44
    %s46 = sphi 0, %s44
    %s47 = sphi 0, %s46
    %s61 = sphi 0, %s47
    %s67 = sphi 0, %s69
    %s70 = sphi 0, %s67
    %s71 = sphi 0, %s70
    %s87 = sphi 0, %s71
    %s91 = sphi 0, %s91
    %s93 = sphi 0, %s91
    %s94 = sphi 0, %s93
    %s108 = sphi 0, %s94
  $region4: #{conv_block.2} parent=0 // loop_header_branch
    %13 = sbr.rel (%p11) target = $region8
  $region5: #{conv_block.2} parent=0 // loop_body
    %s15 = ssub.s32 %s10, 1
    %s16 = ssub.s32 %s10, 2
    %s17 = sadd.s32 %s10, 1
    %s18 = ssub.s32 %s10, %s17
    %p19 = scmp.eq.s32.totalorder %s18, 0
    %s21 = sadd.s32 %s20, 1
    %s22 = scalar_select %p19, %s20, %s21
    %p25 = pneg %p19
    %p26 = scmp.eq.s32.totalorder %s10, 2
    %p27 = por %p25, %p26
    %p28 = scmp.ne.s32.totalorder %s20, %s23
    %p29 = scmp.eq.s32.totalorder %s10, 0
    %p30 = por %p28, %p29
    %p31 = scmp.ne.s32.totalorder %s20, %s23
    %p32 = scmp.eq.s32.totalorder %s15, 2
    %p33 = por %p31, %p32
    %p34 = scmp.ne.s32.totalorder %s23, %s24
    %p35 = scmp.eq.s32.totalorder %s15, 0
    %p36 = por %p34, %p35
    %p37 = scmp.ne.s32.totalorder %s23, %s24
    %p38 = scmp.eq.s32.totalorder %s16, 2
    %p39 = por %p37, %p38
    %p41 = scmp.ne.s32.totalorder %s24, %s40
    %p42 = scmp.eq.s32.totalorder %s16, 0
    %p43 = por %p41, %p42
    %s45 = sadd.s32 %s44, 1
    %p48 = scmp.eq.s32.totalorder %s10, 2
    %p49 = scmp.ne.s32.totalorder %s44, %s46
    %p50 = scmp.eq.s32.totalorder %s10, 0
    %p51 = por %p49, %p50
    %p52 = scmp.ne.s32.totalorder %s44, %s46
    %p53 = scmp.eq.s32.totalorder %s15, 2
    %p54 = por %p52, %p53
    %p55 = scmp.ne.s32.totalorder %s46, %s47
    %p56 = scmp.eq.s32.totalorder %s15, 0
    %p57 = por %p55, %p56
    %p58 = scmp.ne.s32.totalorder %s46, %s47
    %p59 = scmp.eq.s32.totalorder %s16, 2
    %p60 = por %p58, %p59
    %p62 = scmp.ne.s32.totalorder %s47, %s61
    %p63 = scmp.eq.s32.totalorder %s16, 0
    %p64 = por %p62, %p63
    %s65 = ssub.s32 %s10, %s17
    %p66 = scmp.eq.s32.totalorder %s65, 0
    %s68 = sadd.s32 %s67, 1
    %s69 = scalar_select %p66, %s67, %s68
    %p72 = pneg %p66
    %p73 = scmp.eq.s32.totalorder %s10, 2
    %p74 = por %p72, %p73
    %p75 = scmp.ne.s32.totalorder %s67, %s70
    %p76 = scmp.eq.s32.totalorder %s10, 0
    %p77 = por %p75, %p76
    %p78 = scmp.ne.s32.totalorder %s67, %s70
    %p79 = scmp.eq.s32.totalorder %s15, 2
    %p80 = por %p78, %p79
    %p81 = scmp.ne.s32.totalorder %s70, %s71
    %p82 = scmp.eq.s32.totalorder %s15, 0
    %p83 = por %p81, %p82
    %p84 = scmp.ne.s32.totalorder %s70, %s71
    %p85 = scmp.eq.s32.totalorder %s16, 2
    %p86 = por %p84, %p85
    %p88 = scmp.ne.s32.totalorder %s71, %s87
    %p89 = scmp.eq.s32.totalorder %s16, 0
    %p90 = por %p88, %p89
    %s92 = sadd.s32 %s91, 1
    %p95 = scmp.eq.s32.totalorder %s10, 2
    %p96 = scmp.ne.s32.totalorder %s91, %s93
    %p97 = scmp.eq.s32.totalorder %s10, 0
    %p98 = por %p96, %p97
    %p99 = scmp.ne.s32.totalorder %s91, %s93
    %p100 = scmp.eq.s32.totalorder %s15, 2
    %p101 = por %p99, %p100
    %p102 = scmp.ne.s32.totalorder %s93, %s94
    %p103 = scmp.eq.s32.totalorder %s15, 0
    %p104 = por %p102, %p103
    %p105 = scmp.ne.s32.totalorder %s93, %s94
    %p106 = scmp.eq.s32.totalorder %s16, 2
    %p107 = por %p105, %p106
    %p109 = scmp.ne.s32.totalorder %s94, %s108
    %p110 = scmp.eq.s32.totalorder %s16, 0
    %p111 = por %p109, %p110
    %p112 = scmp.le.s32.totalorder 1, %s10
    %p113 = scmp.lt.s32.totalorder %s10, 4
    %p114 = pnand %p112, %p113
    %p115 = pneg %p114
    // Predicated region
    $region9: #{conv_block.2} parent=5 // pred_check
      _
    $region10: #{conv_block.2} parent=5 // pred_check_branch
      %117 = sbr.rel (%p114) target = $region12
    $region11: #{conv_block.2} parent=5 // pred_region
      %s118 = ssub.s32 %s10, 1
      // Predicated region
      $region13: #{conv_block.2} parent=11 // pred_check
        %p119 = pneg %p57
      $region14: #{conv_block.2} parent=11 // pred_check_branch
        %121 = sbr.rel (%p119) target = $region16
      $region15: #{conv_block.2} parent=11 // pred_region
        _
      $region16: #{conv_block.2} parent=11 // pred_fallthru
        _
    $region12: #{conv_block.2} parent=5 // pred_fallthru
      _
    %p122 = scmp.lt.s32.totalorder %s10, 3
    // Predicated region
    $region17: #{conv_block.2} parent=5 // pred_check
      %p123 = pneg %p122
    $region18: #{conv_block.2} parent=5 // pred_check_branch
      %125 = sbr.rel (%p123) target = $region20
    $region19: #{conv_block.2} parent=5 // pred_region
      // Predicated region
      $region21: #{conv_block.2} parent=19 // pred_check
        %p126 = pneg %p30
      $region22: #{conv_block.2} parent=19 // pred_check_branch
        %128 = sbr.rel (%p126) target = $region24
      $region23: #{conv_block.2} parent=19 // pred_region
        %s129 = smul.u32 32, %s10
        %p130 = scmp.lt.s32.totalorder %s129, 95
        %s131 = scalar_select %p130, %s129, 95
        %s132 = smul.addr %s131, 4
        %s133 = scalar_lea.vmem %s0, %s132
        %s134 = smul.u32 32, %s10
      $region24: #{conv_block.2} parent=19 // pred_fallthru
        _
    $region20: #{conv_block.2} parent=5 // pred_fallthru
      _
    %p135 = scmp.le.s32.totalorder 1, %s10
    %p136 = scmp.lt.s32.totalorder %s10, 4
    %p137 = pnand %p135, %p136
    %p138 = pneg %p137
    // Predicated region
    $region25: #{conv_block.2} parent=5 // pred_check
      _
    $region26: #{conv_block.2} parent=5 // pred_check_branch
      %140 = sbr.rel (%p137) target = $region28
    $region27: #{conv_block.2} parent=5 // pred_region
      %s141 = ssub.s32 %s10, 1
      %s142 = smul.u32 32, %s15
      %p143 = scmp.lt.s32.totalorder %s142, 95
      %s144 = scalar_select %p143, %s142, 95
      %s145 = smul.addr %s144, 4
      %s146 = scalar_lea.vmem %s0, %s145
      %p147 = pneg %p36
      %p148 = pneg %p33
      %p149 = pneg %p57
      %p150 = pneg %p54
      %p151 = pneg %p83
      %p152 = pneg %p80
      %s153 = smul.u32 32, %s15
      %p154 = scmp.lt.s32.totalorder %s153, 95
      %s155 = scalar_select %p154, %s153, 95
      %s156 = smul.addr %s155, 8
      %s157 = scalar_lea.vmem %s2, %s156
      %p158 = pneg %p104
      %p159 = pneg %p101
      %s160 = smul.u32 32, %s15
      %p161 = scmp.lt.s32.totalorder %s160, 95
      %s162 = scalar_select %p161, %s160, 95
      %s163 = smul.addr %s162, 4
      %s164 = scalar_lea.vmem %s0, %s163
      %s165 = smul.u32 32, %s15
      %s166 = smul.u32 32, %s15
      %p167 = scmp.lt.s32.totalorder %s166, 95
      %s168 = scalar_select %p167, %s166, 95
      %s169 = smul.addr %s168, 8
      %s170 = scalar_lea.vmem %s2, %s169
      %s171 = smul.u32 32, %s15
      %p173 = scmp.eq.s32.totalorder %s15, 0
      // Predicated region
      $region29: #{conv_block.2} parent=27 // pred_check
        %p174 = pneg %p173
      $region30: #{conv_block.2} parent=27 // pred_check_branch
        %176 = sbr.rel (%p174) target = $region32
      $region31: #{conv_block.2} parent=27 // pred_region
        %177 = vst [vmem:[#allocation2] sm:$0x3] 0.0
      $region32: #{conv_block.2} parent=27 // pred_fallthru
        _
      %v178 = vld [vmem:[%s164] sm:$0xf]
      %v179 = vld [vmem:[%s164 + $0x4] sm:$0xf]
      %v180 = vld [vmem:[%s164 + $0x8] sm:$0xf]
      %v181 = vld [vmem:[%s164 + $0xc] sm:$0xf]
      %v182 = vld [vmem:[%s164 + $0x10] sm:$0xf]
      %v183 = vld [vmem:[%s164 + $0x14] sm:$0xf]
      %v184 = vld [vmem:[%s164 + $0x18] sm:$0xf]
      %v185 = vld [vmem:[%s164 + $0x1c] sm:$0xf]
      %v186 = vld [vmem:[%s164 + $0x20] sm:$0xf]
      %v187 = vld [vmem:[%s164 + $0x24] sm:$0xf]
      %v188 = vld [vmem:[%s164 + $0x28] sm:$0xf]
      %v189 = vld [vmem:[%s164 + $0x2c] sm:$0xf]
      %v190 = vld [vmem:[%s164 + $0x30] sm:$0xf]
      %v191 = vld [vmem:[%s164 + $0x34] sm:$0xf]
      %v192 = vld [vmem:[%s164 + $0x38] sm:$0xf]
      %v193 = vld [vmem:[%s164 + $0x3c] sm:$0xf]
      %v194 = vld [vmem:[%s164 + $0x40] sm:$0xf]
      %v195 = vld [vmem:[%s164 + $0x44] sm:$0xf]
      %v196 = vld [vmem:[%s164 + $0x48] sm:$0xf]
      %v197 = vld [vmem:[%s164 + $0x4c] sm:$0xf]
      %v198 = vld [vmem:[%s164 + $0x50] sm:$0xf]
      %v199 = vld [vmem:[%s164 + $0x54] sm:$0xf]
      %v200 = vld [vmem:[%s164 + $0x58] sm:$0xf]
      %v201 = vld [vmem:[%s164 + $0x5c] sm:$0xf]
      %v202 = vld [vmem:[%s164 + $0x60] sm:$0xf]
      %v203 = vld [vmem:[%s164 + $0x64] sm:$0xf]
      %v204 = vld [vmem:[%s164 + $0x68] sm:$0xf]
      %v205 = vld [vmem:[%s164 + $0x6c] sm:$0xf]
      %v206 = vld [vmem:[%s164 + $0x70] sm:$0xf]
      %v207 = vld [vmem:[%s164 + $0x74] sm:$0xf]
      %v208 = vld [vmem:[%s164 + $0x78] sm:$0xf]
      %v209 = vld [vmem:[%s164 + $0x7c] sm:$0xf]
      %v210 = vld [vmem:[%s1] sm:$0xf]
      %v211 = vld [vmem:[%s1 + $0x4] sm:$0x3]
      %v244 = vunpack.c.l.b16 %v178
      %v245 = vunpack.c.l.b16 %v179
      %v246 = vunpack.c.l.b16 %v180
      %v247 = vunpack.c.l.b16 %v181
      %v248 = vunpack.c.l.b16 %v182
      %v249 = vunpack.c.l.b16 %v183
      %v250 = vunpack.c.l.b16 %v184
      %v251 = vunpack.c.l.b16 %v185
      %v252 = vunpack.c.l.b16 %v186
      %v253 = vunpack.c.l.b16 %v187
      %v254 = vunpack.c.l.b16 %v188
      %v255 = vunpack.c.l.b16 %v189
      %v256 = vunpack.c.l.b16 %v190
      %v257 = vunpack.c.l.b16 %v191
      %v258 = vunpack.c.l.b16 %v192
      %v259 = vunpack.c.l.b16 %v193
      %v260 = vunpack.c.l.b16 %v194
      %v261 = vunpack.c.l.b16 %v195
      %v262 = vunpack.c.l.b16 %v196
      %v263 = vunpack.c.l.b16 %v197
      %v264 = vunpack.c.l.b16 %v198
      %v265 = vunpack.c.l.b16 %v199
      %v266 = vunpack.c.l.b16 %v200
      %v267 = vunpack.c.l.b16 %v201
      %v268 = vunpack.c.l.b16 %v202
      %v269 = vunpack.c.l.b16 %v203
      %v270 = vunpack.c.l.b16 %v204
      %v271 = vunpack.c.l.b16 %v205
      %v272 = vunpack.c.l.b16 %v206
      %v273 = vunpack.c.l.b16 %v207
      %v274 = vunpack.c.l.b16 %v208
      %v275 = vunpack.c.l.b16 %v209
      %v276 = vpack.c.b16 %v245, %v244
      %v277 = vpack.c.b16 %v247, %v246
      %v278 = vpack.c.b16 %v249, %v248
      %v279 = vpack.c.b16 %v251, %v250
      %v280 = vpack.c.b16 %v253, %v252
      %v281 = vpack.c.b16 %v255, %v254
      %v282 = vpack.c.b16 %v257, %v256
      %v283 = vpack.c.b16 %v259, %v258
      %v284 = vpack.c.b16 %v261, %v260
      %v285 = vpack.c.b16 %v263, %v262
      %v286 = vpack.c.b16 %v265, %v264
      %v287 = vpack.c.b16 %v267, %v266
      %v288 = vpack.c.b16 %v269, %v268
      %v289 = vpack.c.b16 %v271, %v270
      %v290 = vpack.c.b16 %v273, %v272
      %v291 = vpack.c.b16 %v275, %v274
      %v294 = vunpack.c.l.b16 %v210
      %v295 = vunpack.c.l.b16 %v211
      %v296 = vpack.c.b16 %v295, %v294
      %vm297 = vcmask 97280
      %v299 = vsel %vm297, %v276, 0
      %v302 = vsel %vm297, %v277, 0
      %v305 = vsel %vm297, %v278, 0
      %v308 = vsel %vm297, %v279, 0
      %v311 = vsel %vm297, %v280, 0
      %v314 = vsel %vm297, %v281, 0
      %v317 = vsel %vm297, %v282, 0
      %v320 = vsel %vm297, %v283, 0
      %v323 = vsel %vm297, %v284, 0
      %v326 = vsel %vm297, %v285, 0
      %v329 = vsel %vm297, %v286, 0
      %v332 = vsel %vm297, %v287, 0
      %v335 = vsel %vm297, %v288, 0
      %v338 = vsel %vm297, %v289, 0
      %v341 = vsel %vm297, %v290, 0
      %v344 = vsel %vm297, %v291, 0
      %vm346 = vcmask 1045504
      %v348 = vsel %vm346, %v296, 0
      %350 = vmatprep.subr.bf16.mxu0 0
      %351 = vmatpush1.bf16.msra.mxu0 %v348
      %352 = vmatprep.subr.bf16.mxu0 0
      %353 = vmatpush1.bf16.msra.mxu0 0
      %354 = vmatprep.subr.bf16.mxu0 0
      %355 = vmatpush1.bf16.msra.mxu0 0
      %356 = vmatprep.subr.bf16.mxu0 0
      %357 = vmatpush1.bf16.msra.mxu0 0
      %358 = vmatprep.subr.bf16.mxu0 0
      %359 = vmatpush1.bf16.msra.mxu0 0
      %360 = vmatprep.subr.bf16.mxu0 0
      %361 = vmatpush1.bf16.msra.mxu0 0
      %362 = vmatprep.subr.bf16.mxu0 0
      %363 = vmatpush1.bf16.msra.mxu0 0
      %364 = vmatprep.subr.bf16.mxu0 0
      %365 = vmatpush1.bf16.msra.mxu0 0
      %366 = vmatprep.subr.bf16.mxu0 0
      %367 = vmatpush1.bf16.msra.mxu0 0
      %368 = vmatprep.subr.bf16.mxu0 0
      %369 = vmatpush1.bf16.msra.mxu0 0
      %370 = vmatprep.subr.bf16.mxu0 0
      %371 = vmatpush1.bf16.msra.mxu0 0
      %372 = vmatprep.subr.bf16.mxu0 0
      %373 = vmatpush1.bf16.msra.mxu0 0
      %374 = vmatprep.subr.bf16.mxu0 0
      %375 = vmatpush1.bf16.msra.mxu0 0
      %376 = vmatprep.subr.bf16.mxu0 0
      %377 = vmatpush1.bf16.msra.mxu0 0
      %378 = vmatprep.subr.bf16.mxu0 0
      %379 = vmatpush1.bf16.msra.mxu0 0
      %380 = vmatprep.subr.bf16.mxu0 0
      %381 = vmatpush1.bf16.msra.mxu0 0
      %382 = vmatprep.mubr.bf16.mxu0 0
      %383 = vmatmul.mubr.bf16.gmra.mrb[0].mxu0 %v299
      %v384 = vpop.f32.mrb[0].mxu0
      %v385 = vadd.f32 0.0, %v384
      %v386 = vpop.f32.mrb[0].mxu0
      %v387 = vpop.f32.mrb[0].mxu0
      %v388 = vadd.f32 0.0, %v387
      %v389 = vpop.f32.mrb[0].mxu0
      %390 = vmatprep.mubr.bf16.mxu0 0
      %391 = vmatmul.mubr.bf16.gmra.mrb[0].mxu0 %v302
      %v392 = vpop.f32.mrb[0].mxu0
      %v393 = vadd.f32 0.0, %v392
      %v394 = vpop.f32.mrb[0].mxu0
      %v395 = vpop.f32.mrb[0].mxu0
      %v396 = vadd.f32 0.0, %v395
      %v397 = vpop.f32.mrb[0].mxu0
      %398 = vmatprep.mubr.bf16.mxu0 0
      %399 = vmatmul.mubr.bf16.gmra.mrb[0].mxu0 %v305
      %v400 = vpop.f32.mrb[0].mxu0
      %v401 = vadd.f32 0.0, %v400
      %v402 = vpop.f32.mrb[0].mxu0
      %v403 = vpop.f32.mrb[0].mxu0
      %v404 = vadd.f32 0.0, %v403
      %v405 = vpop.f32.mrb[0].mxu0
      %406 = vmatprep.mubr.bf16.mxu0 0
      %407 = vmatmul.mubr.bf16.gmra.mrb[0].mxu0 %v308
      %v408 = vpop.f32.mrb[0].mxu0
      %v409 = vadd.f32 0.0, %v408
      %v410 = vpop.f32.mrb[0].mxu0
      %v411 = vpop.f32.mrb[0].mxu0
      %v412 = vadd.f32 0.0, %v411
      %v413 = vpop.f32.mrb[0].mxu0
      %414 = vmatprep.mubr.bf16.mxu0 0
      %415 = vmatmul.mubr.bf16.gmra.mrb[0].mxu0 %v311
      %v416 = vpop.f32.mrb[0].mxu0
      %v417 = vadd.f32 0.0, %v416
      %v418 = vpop.f32.mrb[0].mxu0
      %v419 = vpop.f32.mrb[0].mxu0
      %v420 = vadd.f32 0.0, %v419
      %v421 = vpop.f32.mrb[0].mxu0
      %422 = vmatprep.mubr.bf16.mxu0 0
      %423 = vmatmul.mubr.bf16.gmra.mrb[0].mxu0 %v314
      %v424 = vpop.f32.mrb[0].mxu0
      %v425 = vadd.f32 0.0, %v424
      %v426 = vpop.f32.mrb[0].mxu0
      %v427 = vpop.f32.mrb[0].mxu0
      %v428 = vadd.f32 0.0, %v427
      %v429 = vpop.f32.mrb[0].mxu0
      %430 = vmatprep.mubr.bf16.mxu0 0
      %431 = vmatmul.mubr.bf16.gmra.mrb[0].mxu0 %v317
      %v432 = vpop.f32.mrb[0].mxu0
      %v433 = vadd.f32 0.0, %v432
      %v434 = vpop.f32.mrb[0].mxu0
      %v435 = vpop.f32.mrb[0].mxu0
      %v436 = vadd.f32 0.0, %v435
      %v437 = vpop.f32.mrb[0].mxu0
      %438 = vmatprep.mubr.bf16.mxu0 0
      %439 = vmatmul.mubr.bf16.gmra.mrb[0].mxu0 %v320
      %v440 = vpop.f32.mrb[0].mxu0
      %v441 = vadd.f32 0.0, %v440
      %v442 = vpop.f32.mrb[0].mxu0
      %v443 = vpop.f32.mrb[0].mxu0
      %v444 = vadd.f32 0.0, %v443
      %v445 = vpop.f32.mrb[0].mxu0
      %446 = vmatprep.mubr.bf16.mxu0 0
      %447 = vmatmul.mubr.bf16.gmra.mrb[0].mxu0 %v323
      %v448 = vpop.f32.mrb[0].mxu0
      %v449 = vadd.f32 0.0, %v448
      %v450 = vpop.f32.mrb[0].mxu0
      %v451 = vpop.f32.mrb[0].mxu0
      %v452 = vadd.f32 0.0, %v451
      %v453 = vpop.f32.mrb[0].mxu0
      %454 = vmatprep.mubr.bf16.mxu0 0
      %455 = vmatmul.mubr.bf16.gmra.mrb[0].mxu0 %v326
      %v456 = vpop.f32.mrb[0].mxu0
      %v457 = vadd.f32 0.0, %v456
      %v458 = vpop.f32.mrb[0].mxu0
      %v459 = vpop.f32.mrb[0].mxu0
      %v460 = vadd.f32 0.0, %v459
      %v461 = vpop.f32.mrb[0].mxu0
      %462 = vmatprep.mubr.bf16.mxu0 0
      %463 = vmatmul.mubr.bf16.gmra.mrb[0].mxu0 %v329
      %v464 = vpop.f32.mrb[0].mxu0
      %v465 = vadd.f32 0.0, %v464
      %v466 = vpop.f32.mrb[0].mxu0
      %v467 = vpop.f32.mrb[0].mxu0
      %v468 = vadd.f32 0.0, %v467
      %v469 = vpop.f32.mrb[0].mxu0
      %470 = vmatprep.mubr.bf16.mxu0 0
      %471 = vmatmul.mubr.bf16.gmra.mrb[0].mxu0 %v332
      %v472 = vpop.f32.mrb[0].mxu0
      %v473 = vadd.f32 0.0, %v472
      %v474 = vpop.f32.mrb[0].mxu0
      %v475 = vpop.f32.mrb[0].mxu0
      %v476 = vadd.f32 0.0, %v475
      %v477 = vpop.f32.mrb[0].mxu0
      %478 = vmatprep.mubr.bf16.mxu0 0
      %479 = vmatmul.mubr.bf16.gmra.mrb[0].mxu0 %v335
      %v480 = vpop.f32.mrb[0].mxu0
      %v481 = vadd.f32 0.0, %v480
      %v482 = vpop.f32.mrb[0].mxu0
      %v483 = vpop.f32.mrb[0].mxu0
      %v484 = vadd.f32 0.0, %v483
      %v485 = vpop.f32.mrb[0].mxu0
      %486 = vmatprep.mubr.bf16.mxu0 0
      %487 = vmatmul.mubr.bf16.gmra.mrb[0].mxu0 %v338
      %v488 = vpop.f32.mrb[0].mxu0
      %v489 = vadd.f32 0.0, %v488
      %v490 = vpop.f32.mrb[0].mxu0
      %v491 = vpop.f32.mrb[0].mxu0
      %v492 = vadd.f32 0.0, %v491
      %v493 = vpop.f32.mrb[0].mxu0
      %494 = vmatprep.mubr.bf16.mxu0 0
      %495 = vmatmul.mubr.bf16.gmra.mrb[0].mxu0 %v341
      %v496 = vpop.f32.mrb[0].mxu0
      %v497 = vadd.f32 0.0, %v496
      %v498 = vpop.f32.mrb[0].mxu0
      %v499 = vpop.f32.mrb[0].mxu0
      %v500 = vadd.f32 0.0, %v499
      %v501 = vpop.f32.mrb[0].mxu0
      %502 = vmatprep.mubr.bf16.mxu0 0
      %503 = vmatmul.mubr.bf16.gmra.mrb[0].mxu0 %v344
      %v504 = vpop.f32.mrb[0].mxu0
      %v505 = vadd.f32 0.0, %v504
      %v506 = vpop.f32.mrb[0].mxu0
      %v507 = vpop.f32.mrb[0].mxu0
      %v508 = vadd.f32 0.0, %v507
      %v509 = vpop.f32.mrb[0].mxu0
      %510 = vdwg.mxu0
      %511 = vst [vmem:[%s170] sm:$0xff] %v385
      %512 = vst [vmem:[%s170 + $0x8] sm:$0xff] %v388
      %513 = vst [vmem:[%s170 + $0x10] sm:$0xff] %v393
      %514 = vst [vmem:[%s170 + $0x18] sm:$0xff] %v396
      %515 = vst [vmem:[%s170 + $0x20] sm:$0xff] %v401
      %516 = vst [vmem:[%s170 + $0x28] sm:$0xff] %v404
      %517 = vst [vmem:[%s170 + $0x30] sm:$0xff] %v409
      %518 = vst [vmem:[%s170 + $0x38] sm:$0xff] %v412
      %519 = vst [vmem:[%s170 + $0x40] sm:$0xff] %v417
      %520 = vst [vmem:[%s170 + $0x48] sm:$0xff] %v420
      %521 = vst [vmem:[%s170 + $0x50] sm:$0xff] %v425
      %522 = vst [vmem:[%s170 + $0x58] sm:$0xff] %v428
      %523 = vst [vmem:[%s170 + $0x60] sm:$0xff] %v433
      %524 = vst [vmem:[%s170 + $0x68] sm:$0xff] %v436
      %525 = vst [vmem:[%s170 + $0x70] sm:$0xff] %v441
      %526 = vst [vmem:[%s170 + $0x78] sm:$0xff] %v444
      %527 = vst [vmem:[%s170 + $0x80] sm:$0xff] %v449
      %528 = vst [vmem:[%s170 + $0x88] sm:$0xff] %v452
      %529 = vst [vmem:[%s170 + $0x90] sm:$0xff] %v457
      %530 = vst [vmem:[%s170 + $0x98] sm:$0xff] %v460
      %531 = vst [vmem:[%s170 + $0xa0] sm:$0xff] %v465
      %532 = vst [vmem:[%s170 + $0xa8] sm:$0xff] %v468
      %533 = vst [vmem:[%s170 + $0xb0] sm:$0xff] %v473
      %534 = vst [vmem:[%s170 + $0xb8] sm:$0xff] %v476
      %535 = vst [vmem:[%s170 + $0xc0] sm:$0xff] %v481
      %536 = vst [vmem:[%s170 + $0xc8] sm:$0xff] %v484
      %537 = vst [vmem:[%s170 + $0xd0] sm:$0xff] %v489
      %538 = vst [vmem:[%s170 + $0xd8] sm:$0xff] %v492
      %539 = vst [vmem:[%s170 + $0xe0] sm:$0xff] %v497
      %540 = vst [vmem:[%s170 + $0xe8] sm:$0xff] %v500
      %541 = vst [vmem:[%s170 + $0xf0] sm:$0xff] %v505
      %542 = vst [vmem:[%s170 + $0xf8] sm:$0xff] %v508
      %s543 = smul.u32 %s15, 256
      %v544 = vlaneseq
      %v545 = vshrl.u32 %v544, 7
      %v546 = vadd.s32 %v545, 8
      %v547 = vadd.s32 %v545, 16
      %v548 = vadd.s32 %v545, 24
      %v549 = vadd.s32 %v545, 32
      %v550 = vadd.s32 %v545, 40
      %v551 = vadd.s32 %v545, 48
      %v552 = vadd.s32 %v545, 56
      %v553 = vadd.s32 %v545, 64
      %v554 = vadd.s32 %v545, 72
      %v555 = vadd.s32 %v545, 80
      %v556 = vadd.s32 %v545, 88
      %v557 = vadd.s32 %v545, 96
      %v558 = vadd.s32 %v545, 104
      %v559 = vadd.s32 %v545, 112
      %v560 = vadd.s32 %v545, 120
      %v561 = vadd.s32 %v545, 128
      %v562 = vadd.s32 %v545, 136
      %v563 = vadd.s32 %v545, 144
      %v564 = vadd.s32 %v545, 152
      %v565 = vadd.s32 %v545, 160
      %v566 = vadd.s32 %v545, 168
      %v567 = vadd.s32 %v545, 176
      %v568 = vadd.s32 %v545, 184
      %v569 = vadd.s32 %v545, 192
      %v570 = vadd.s32 %v545, 200
      %v571 = vadd.s32 %v545, 208
      %v572 = vadd.s32 %v545, 216
      %v573 = vadd.s32 %v545, 224
      %v574 = vadd.s32 %v545, 232
      %v575 = vadd.s32 %v545, 240
      %v576 = vadd.s32 %v545, 248
      %v577 = vstv %s543
      %v578 = vadd.s32 %v577, %v545
      %v579 = vadd.s32 %v577, %v546
      %v580 = vadd.s32 %v577, %v547
      %v581 = vadd.s32 %v577, %v548
      %v582 = vadd.s32 %v577, %v549
      %v583 = vadd.s32 %v577, %v550
      %v584 = vadd.s32 %v577, %v551
      %v585 = vadd.s32 %v577, %v552
      %v586 = vadd.s32 %v577, %v553
      %v587 = vadd.s32 %v577, %v554
      %v588 = vadd.s32 %v577, %v555
      %v589 = vadd.s32 %v577, %v556
      %v590 = vadd.s32 %v577, %v557
      %v591 = vadd.s32 %v577, %v558
      %v592 = vadd.s32 %v577, %v559
      %v593 = vadd.s32 %v577, %v560
      %v594 = vadd.s32 %v577, %v561
      %v595 = vadd.s32 %v577, %v562
      %v596 = vadd.s32 %v577, %v563
      %v597 = vadd.s32 %v577, %v564
      %v598 = vadd.s32 %v577, %v565
      %v599 = vadd.s32 %v577, %v566
      %v600 = vadd.s32 %v577, %v567
      %v601 = vadd.s32 %v577, %v568
      %v602 = vadd.s32 %v577, %v569
      %v603 = vadd.s32 %v577, %v570
      %v604 = vadd.s32 %v577, %v571
      %v605 = vadd.s32 %v577, %v572
      %v606 = vadd.s32 %v577, %v573
      %v607 = vadd.s32 %v577, %v574
      %v608 = vadd.s32 %v577, %v575
      %v609 = vadd.s32 %v577, %v576
      %vm610 = vcmp.lt.s32.totalorder %v578, 596
      %vm611 = vcmp.lt.s32.totalorder %v579, 596
      %vm612 = vcmp.lt.s32.totalorder %v580, 596
      %vm613 = vcmp.lt.s32.totalorder %v581, 596
      %vm614 = vcmp.lt.s32.totalorder %v582, 596
      %vm615 = vcmp.lt.s32.totalorder %v583, 596
      %vm616 = vcmp.lt.s32.totalorder %v584, 596
      %vm617 = vcmp.lt.s32.totalorder %v585, 596
      %vm618 = vcmp.lt.s32.totalorder %v586, 596
      %vm619 = vcmp.lt.s32.totalorder %v587, 596
      %vm620 = vcmp.lt.s32.totalorder %v588, 596
      %vm621 = vcmp.lt.s32.totalorder %v589, 596
      %vm622 = vcmp.lt.s32.totalorder %v590, 596
      %vm623 = vcmp.lt.s32.totalorder %v591, 596
      %vm624 = vcmp.lt.s32.totalorder %v592, 596
      %vm625 = vcmp.lt.s32.totalorder %v593, 596
      %vm626 = vcmp.lt.s32.totalorder %v594, 596
      %vm627 = vcmp.lt.s32.totalorder %v595, 596
      %vm628 = vcmp.lt.s32.totalorder %v596, 596
      %vm629 = vcmp.lt.s32.totalorder %v597, 596
      %vm630 = vcmp.lt.s32.totalorder %v598, 596
      %vm631 = vcmp.lt.s32.totalorder %v599, 596
      %vm632 = vcmp.lt.s32.totalorder %v600, 596
      %vm633 = vcmp.lt.s32.totalorder %v601, 596
      %vm634 = vcmp.lt.s32.totalorder %v602, 596
      %vm635 = vcmp.lt.s32.totalorder %v603, 596
      %vm636 = vcmp.lt.s32.totalorder %v604, 596
      %vm637 = vcmp.lt.s32.totalorder %v605, 596
      %vm638 = vcmp.lt.s32.totalorder %v606, 596
      %vm639 = vcmp.lt.s32.totalorder %v607, 596
      %vm640 = vcmp.lt.s32.totalorder %v608, 596
      %vm641 = vcmp.lt.s32.totalorder %v609, 596
      %v642 = vsel %vm610, %v385, 0.0
      %v643 = vsel %vm611, %v388, 0.0
      %v644 = vsel %vm612, %v393, 0.0
      %v645 = vsel %vm613, %v396, 0.0
      %v646 = vsel %vm614, %v401, 0.0
      %v647 = vsel %vm615, %v404, 0.0
      %v648 = vsel %vm616, %v409, 0.0
      %v649 = vsel %vm617, %v412, 0.0
      %v650 = vsel %vm618, %v417, 0.0
      %v651 = vsel %vm619, %v420, 0.0
      %v652 = vsel %vm620, %v425, 0.0
      %v653 = vsel %vm621, %v428, 0.0
      %v654 = vsel %vm622, %v433, 0.0
      %v655 = vsel %vm623, %v436, 0.0
      %v656 = vsel %vm624, %v441, 0.0
      %v657 = vsel %vm625, %v444, 0.0
      %v658 = vsel %vm626, %v449, 0.0
      %v659 = vsel %vm627, %v452, 0.0
      %v660 = vsel %vm628, %v457, 0.0
      %v661 = vsel %vm629, %v460, 0.0
      %v662 = vsel %vm630, %v465, 0.0
      %v663 = vsel %vm631, %v468, 0.0
      %v664 = vsel %vm632, %v473, 0.0
      %v665 = vsel %vm633, %v476, 0.0
      %v666 = vsel %vm634, %v481, 0.0
      %v667 = vsel %vm635, %v484, 0.0
      %v668 = vsel %vm636, %v489, 0.0
      %v669 = vsel %vm637, %v492, 0.0
      %v670 = vsel %vm638, %v497, 0.0
      %v671 = vsel %vm639, %v500, 0.0
      %v672 = vsel %vm640, %v505, 0.0
      %v673 = vsel %vm641, %v508, 0.0
      %v674 = vld [vmem:[#allocation2] sm:$0x1]
      %v675 = vadd.f32 %v642, %v643
      %v676 = vadd.f32 %v675, %v644
      %v677 = vadd.f32 %v676, %v645
      %v678 = vadd.f32 %v677, %v646
      %v679 = vadd.f32 %v678, %v647
      %v680 = vadd.f32 %v679, %v648
      %v681 = vadd.f32 %v680, %v649
      %v682 = vadd.f32 %v681, %v650
      %v683 = vadd.f32 %v682, %v651
      %v684 = vadd.f32 %v683, %v652
      %v685 = vadd.f32 %v684, %v653
      %v686 = vadd.f32 %v685, %v654
      %v687 = vadd.f32 %v686, %v655
      %v688 = vadd.f32 %v687, %v656
      %v689 = vadd.f32 %v688, %v657
      %v690 = vadd.f32 %v689, %v658
      %v691 = vadd.f32 %v690, %v659
      %v692 = vadd.f32 %v691, %v660
      %v693 = vadd.f32 %v692, %v661
      %v694 = vadd.f32 %v693, %v662
      %v695 = vadd.f32 %v694, %v663
      %v696 = vadd.f32 %v695, %v664
      %v697 = vadd.f32 %v696, %v665
      %v698 = vadd.f32 %v697, %v666
      %v699 = vadd.f32 %v698, %v667
      %v700 = vadd.f32 %v699, %v668
      %v701 = vadd.f32 %v700, %v669
      %v702 = vadd.f32 %v701, %v670
      %v703 = vadd.f32 %v702, %v671
      %v704 = vadd.f32 %v703, %v672
      %v705 = vadd.f32 %v704, %v673
      %v706 = vrot.slane %v705, 4
      %v707 = vadd.f32 %v705, %v706
      %v708 = vrot.slane %v707, 2
      %v709 = vadd.f32 %v707, %v708
      %v710 = vrot.slane %v709, 1
      %v711 = vadd.f32 %v709, %v710
      %v712 = vadd.f32 %v674, %v711
      %713 = vst [vmem:[#allocation2] sm:$0x1] %v712
      %v714 = vld [vmem:[#allocation2 + $0x1] sm:$0x1]
      %v715 = vmul.f32 %v642, %v642
      %v716 = vmul.f32 %v643, %v643
      %v717 = vmul.f32 %v644, %v644
      %v718 = vmul.f32 %v645, %v645
      %v719 = vmul.f32 %v646, %v646
      %v720 = vmul.f32 %v647, %v647
      %v721 = vmul.f32 %v648, %v648
      %v722 = vmul.f32 %v649, %v649
      %v723 = vmul.f32 %v650, %v650
      %v724 = vmul.f32 %v651, %v651
      %v725 = vmul.f32 %v652, %v652
      %v726 = vmul.f32 %v653, %v653
      %v727 = vmul.f32 %v654, %v654
      %v728 = vmul.f32 %v655, %v655
      %v729 = vmul.f32 %v656, %v656
      %v730 = vmul.f32 %v657, %v657
      %v731 = vmul.f32 %v658, %v658
      %v732 = vmul.f32 %v659, %v659
      %v733 = vmul.f32 %v660, %v660
      %v734 = vmul.f32 %v661, %v661
      %v735 = vmul.f32 %v662, %v662
      %v736 = vmul.f32 %v663, %v663
      %v737 = vmul.f32 %v664, %v664
      %v738 = vmul.f32 %v665, %v665
      %v739 = vmul.f32 %v666, %v666
      %v740 = vmul.f32 %v667, %v667
      %v741 = vmul.f32 %v668, %v668
      %v742 = vmul.f32 %v669, %v669
      %v743 = vmul.f32 %v670, %v670
      %v744 = vmul.f32 %v671, %v671
      %v745 = vmul.f32 %v672, %v672
      %v746 = vmul.f32 %v673, %v673
      %v747 = vadd.f32 %v715, %v716
      %v748 = vadd.f32 %v747, %v717
      %v749 = vadd.f32 %v748, %v718
      %v750 = vadd.f32 %v749, %v719
      %v751 = vadd.f32 %v750, %v720
      %v752 = vadd.f32 %v751, %v721
      %v753 = vadd.f32 %v752, %v722
      %v754 = vadd.f32 %v753, %v723
      %v755 = vadd.f32 %v754, %v724
      %v756 = vadd.f32 %v755, %v725
      %v757 = vadd.f32 %v756, %v726
      %v758 = vadd.f32 %v757, %v727
      %v759 = vadd.f32 %v758, %v728
      %v760 = vadd.f32 %v759, %v729
      %v761 = vadd.f32 %v760, %v730
      %v762 = vadd.f32 %v761, %v731
      %v763 = vadd.f32 %v762, %v732
      %v764 = vadd.f32 %v763, %v733
      %v765 = vadd.f32 %v764, %v734
      %v766 = vadd.f32 %v765, %v735
      %v767 = vadd.f32 %v766, %v736
      %v768 = vadd.f32 %v767, %v737
      %v769 = vadd.f32 %v768, %v738
      %v770 = vadd.f32 %v769, %v739
      %v771 = vadd.f32 %v770, %v740
      %v772 = vadd.f32 %v771, %v741
      %v773 = vadd.f32 %v772, %v742
      %v774 = vadd.f32 %v773, %v743
      %v775 = vadd.f32 %v774, %v744
      %v776 = vadd.f32 %v775, %v745
      %v777 = vadd.f32 %v776, %v746
      %v778 = vrot.slane %v777, 4
      %v779 = vadd.f32 %v777, %v778
      %v780 = vrot.slane %v779, 2
      %v781 = vadd.f32 %v779, %v780
      %v782 = vrot.slane %v781, 1
      %v783 = vadd.f32 %v781, %v782
      %v784 = vadd.f32 %v714, %v783
      %785 = vst [vmem:[#allocation2 + $0x1] sm:$0x1] %v784
      %p786 = scmp.eq.s32.totalorder %s15, 2
      // Predicated region
      $region33: #{conv_block.2} parent=27 // pred_check
        %p787 = pneg %p786
      $region34: #{conv_block.2} parent=27 // pred_check_branch
        %789 = sbr.rel (%p787) target = $region36
      $region35: #{conv_block.2} parent=27 // pred_region
        %v790 = vld [vmem:[#allocation2] sm:$0x1]
        %v791 = vmul.f32 %v790, 0.0016778524
        %v792 = vld [vmem:[#allocation2 + $0x1] sm:$0x1]
        %v793 = vmul.f32 %v792, 0.0016778524
        %v794 = vmul.f32 %v791, %v791
        %v795 = vsub.f32 %v793, %v794
        %v796 = vmax.f32 %v795, 0.0
        %797 = vst [vmem:[%s3] sm:$0x1] %v791
        %v798 = vadd.f32 %v796, 1e-05
        %v799 = vrsqrt.pop %v798
        %800 = vst [vmem:[%s3 + $0x1] sm:$0x1] %v799
      $region36: #{conv_block.2} parent=27 // pred_fallthru
        _
      %s801 = smul.u32 32, %s15
      %p802 = scmp.lt.s32.totalorder %s801, 95
      %s803 = scalar_select %p802, %s801, 95
      %s804 = smul.addr %s803, 8
      %s805 = scalar_lea.vmem %s2, %s804
      // Predicated region
      $region37: #{conv_block.2} parent=27 // pred_check
        %p806 = pneg %p80
      $region38: #{conv_block.2} parent=27 // pred_check_branch
        %808 = sbr.rel (%p806) target = $region40
      $region39: #{conv_block.2} parent=27 // pred_region
        %s809 = smul.u32 32, %s15
      $region40: #{conv_block.2} parent=27 // pred_fallthru
        _
      // Predicated region
      $region41: #{conv_block.2} parent=27 // pred_check
        %p810 = pneg %p101
      $region42: #{conv_block.2} parent=27 // pred_check_branch
        %812 = sbr.rel (%p810) target = $region44
      $region43: #{conv_block.2} parent=27 // pred_region
        _
      $region44: #{conv_block.2} parent=27 // pred_fallthru
        _
      // Predicated region
      $region45: #{conv_block.2} parent=27 // pred_check
        %p813 = pneg %p101
      $region46: #{conv_block.2} parent=27 // pred_check_branch
        %815 = sbr.rel (%p813) target = $region48
      $region47: #{conv_block.2} parent=27 // pred_region
        _
      $region48: #{conv_block.2} parent=27 // pred_fallthru
        _
    $region28: #{conv_block.2} parent=5 // pred_fallthru
      _
    %p816 = scmp.le.s32.totalorder 2, %s10
    // Predicated region
    $region49: #{conv_block.2} parent=5 // pred_check
      %p817 = pneg %p816
    $region50: #{conv_block.2} parent=5 // pred_check_branch
      %819 = sbr.rel (%p817) target = $region52
    $region51: #{conv_block.2} parent=5 // pred_region
      %s820 = ssub.s32 %s10, 2
      // Predicated region
      $region53: #{conv_block.2} parent=51 // pred_check
        %p821 = pneg %p86
      $region54: #{conv_block.2} parent=51 // pred_check_branch
        %823 = sbr.rel (%p821) target = $region56
      $region55: #{conv_block.2} parent=51 // pred_region
        %s824 = smul.u32 32, %s16
        %p825 = scmp.lt.s32.totalorder %s824, 95
        %s826 = scalar_select %p825, %s824, 95
        %s827 = smul.addr %s826, 8
        %s828 = scalar_lea.vmem %s2, %s827
      $region56: #{conv_block.2} parent=51 // pred_fallthru
        _
    $region52: #{conv_block.2} parent=5 // pred_fallthru
      _
  $region6: #{conv_block.2} parent=0 // loop_footer
    %s14 = sadd.s32 1, %s10
  $region7: #{conv_block.2} parent=0 // loop_footer_branch
    %9 = sbr.rel target = $region3
  $region8: #{conv_block.2} parent=0 // loop_exit
    _

</llo_original>
